<compile_context>
chip_gen: v6e
topology: v6e:2x2x1
jax: 0.10.0
libtpu: 0.0.40
codegen_flags: <defaults>
</compile_context>

<pallas_src>
import functools

import jax
import jax.numpy as jnp
import numpy as np
from jax.experimental import pallas as pl
from jax.experimental.pallas import tpu as pltpu

# torch computes hue on img*255 with eps=1e-10.  Hue is scale invariant, so the
# 255 is folded into the epsilon:
#   60*(g-b)*255 / ((mx-mn)*255 + 1e-10)  ==  60*(g-b) / ((mx-mn) + 1e-10/255)
_EPS = 1e-10 / 255.0


def _write_hue_candidates(x, cand_ref):
    """x: (3, tile_h, W) f32 channel data of *batch 0*.  Writes the three hue
    candidates (r-max / g-max / b-max branches) into the VMEM cache."""
    r, g, b = x[0], x[1], x[2]
    mx = jnp.maximum(jnp.maximum(r, g), b)
    mn = jnp.minimum(jnp.minimum(r, g), b)
    inv = 60.0 / (mx - mn + _EPS)          # exact divide (keeps rtol tight)
    cand_ref[0] = (g - b) * inv
    cand_ref[1] = (b - r) * inv + 120.0
    cand_ref[2] = (r - g) * inv + 240.0


def _select_hue(x, cand_ref):
    """Torch gather quirk: channel *selection* (argmax, first-max-wins) comes
    from batch n's channels `x`; hue *values* come from the batch-0 candidate
    cache `cand_ref`."""
    r, g, b = x[0], x[1], x[2]
    is_r = jnp.logical_and(r >= g, r >= b)
    is_g = jnp.logical_and(jnp.logical_not(is_r), g >= b)
    return jnp.where(is_r, cand_ref[0], jnp.where(is_g, cand_ref[1], cand_ref[2]))


def _lhue_kernel(haze_ref, dehaze_ref, ph_ref, pw_ref, out_ref,
                 cand_hz, cand_dh, acc_ref, *, scale):
    i = pl.program_id(1)                   # row tile within this split
    bi = pl.program_id(2)                  # batch index (innermost)
    last_i = pl.num_programs(1) - 1
    last_b = pl.num_programs(2) - 1

    @pl.when(jnp.logical_and(i == 0, bi == 0))
    def _init():
        acc_ref[...] = jnp.zeros_like(acc_ref)

    hz = haze_ref[...].astype(jnp.float32)     # (3, tile_h, W)
    dh = dehaze_ref[...].astype(jnp.float32)

    # Hue values always come from batch 0; compute them once per row tile
    # (batch is the innermost grid axis) and keep them in VMEM for all batches.
    @pl.when(bi == 0)
    def _stash():
        _write_hue_candidates(hz, cand_hz)
        _write_hue_candidates(dh, cand_dh)

    d = _select_hue(hz, cand_hz) - _select_hue(dh, cand_dh)   # (tile_h, W)

    # bs x bs average pool of the difference: rows then columns, both as tiny
    # constant 1/bs matmuls on the otherwise-idle MXU.
    rowp = jnp.dot(ph_ref[...], d,
                   preferred_element_type=jnp.float32,
                   precision=jax.lax.Precision.HIGHEST)        # (tile_h/bs, W)
    pooled = jnp.dot(rowp, pw_ref[...],
                     preferred_element_type=jnp.float32,
                     precision=jax.lax.Precision.HIGHEST)      # (tile_h/bs, Wo)

    acc_ref[...] += pooled * pooled

    @pl.when(jnp.logical_and(i == last_i, bi == last_b))
    def _finalize():
        total = jnp.sum(acc_ref[...]) * scale
        out_ref[...] = jnp.full(out_ref.shape, total, dtype=out_ref.dtype)


def _pick_tile_h(h, bs, w, itemsize, budget_bytes):
    """Largest row tile (multiple of bs, 8-aligned or full-H, divides H) whose
    pipeline + scratch footprint fits the VMEM budget; prefers >= 2 tiles so
    the row axis can also be split across TensorCores."""
    per_row = 4 * 3 * w * itemsize + 2 * 3 * w * 4   # 2 in x 2 bufs + 2 caches
    max_rows = max(1, budget_bytes // per_row)
    cands = [t for t in range(bs, h + 1, bs)
             if h % t == 0 and (t % 8 == 0 or t == h)]
    in_budget = [t for t in cands if t <= max_rows]
    multi = [t for t in in_budget if h // t >= 2]
    if multi:
        return max(multi)
    if in_budget:
        return max(in_budget)
    return min(cands)   # pathological (H, bs): smallest legal tile


def l_hue(haze, dehaze, batch_size):
    """Pallas equivalent of L_hue(batch_size).forward(haze, dehaze)."""
    n, c, h, w = haze.shape
    assert c == 3 and dehaze.shape == haze.shape
    bs = int(batch_size)
    assert h % bs == 0 and w % bs == 0, "AvgPool2d window must tile the image"
    ho, wo = h // bs, w // bs

    # Keep the storage dtype (bf16/f16 stay narrow in HBM; upcast in-kernel).
    if not jnp.issubdtype(haze.dtype, jnp.floating):
        haze = haze.astype(jnp.float32)
    if not jnp.issubdtype(dehaze.dtype, jnp.floating):
        dehaze = dehaze.astype(jnp.float32)
    itemsize = max(haze.dtype.itemsize, dehaze.dtype.itemsize)

    tile_h = _pick_tile_h(h, bs, w, itemsize, budget_bytes=16 * 1024 * 1024)
    ho_t = tile_h // bs
    n_row_tiles = h // tile_h

    # Split row tiles into two independent halves (per-half accumulator +
    # partial output) so both TensorCores are used on dual-core chips (v7x).
    n_splits = 2 if n_row_tiles % 2 == 0 else 1
    tiles_per_split = n_row_tiles // n_splits

    # Constant avg-pool matrices with 1/bs folded in -> pooled values are true
    # averages (keeps the accumulator O(hue)).
    ph = jnp.repeat(jnp.eye(ho_t, dtype=jnp.float32), bs, axis=1) / bs  # (ho_t, tile_h)
    pw = jnp.repeat(jnp.eye(wo, dtype=jnp.float32), bs, axis=0) / bs    # (W, Wo)

    # k = mean over (N, Ho, Wo) of pooled_diff^2 / 3600
    scale = 1.0 / (float(n) * float(ho) * float(wo) * 3600.0)

    def img_map(s, i, b):
        return (b, 0, s * tiles_per_split + i, 0)

    grid_spec = pltpu.PrefetchScalarGridSpec(
        num_scalar_prefetch=0,
        grid=(n_splits, tiles_per_split, n),      # batch innermost
        in_specs=[
            pl.BlockSpec((None, 3, tile_h, w), img_map),
            pl.BlockSpec((None, 3, tile_h, w), img_map),
            pl.BlockSpec((ho_t, tile_h), lambda s, i, b: (0, 0)),
            pl.BlockSpec((w, wo), lambda s, i, b: (0, 0)),
        ],
        out_specs=pl.BlockSpec((None, 8, 128), lambda s, i, b: (s, 0, 0)),
        scratch_shapes=[
            pltpu.VMEM((3, tile_h, w), jnp.float32),   # batch-0 haze hue candidates
            pltpu.VMEM((3, tile_h, w), jnp.float32),   # batch-0 dehaze hue candidates
            pltpu.VMEM((ho_t, wo), jnp.float32),       # running sum of pooled diff^2
        ],
    )

    est_vmem = (4 * 3 * tile_h * w * itemsize          # 2 inputs x 2 pipeline bufs
                + 2 * 3 * tile_h * w * 4               # candidate caches
                + 2 * (ho_t * tile_h + w * wo) * 4     # pool matrices (x2 bufs)
                + ho_t * wo * 4 + 2 * 8 * 128 * 4)
    vmem_limit = int(min(100 * 1024 * 1024,
                         max(32 * 1024 * 1024, (est_vmem * 3) // 2)))

    out = pl.pallas_call(
        functools.partial(_lhue_kernel, scale=scale),
        out_shape=jax.ShapeDtypeStruct((n_splits, 8, 128), jnp.float32),
        grid_spec=grid_spec,
        compiler_params=pltpu.CompilerParams(
            dimension_semantics=("parallel", "arbitrary", "arbitrary"),
            vmem_limit_bytes=vmem_limit,
        ),
    )(haze, dehaze, ph, pw)
    return jnp.sum(out[:, 0, 0])


# ---------------- pure-JAX reference (mirrors the torch code literally) -----
def _hue_ref(img, eps=1e-10):
    img = img.astype(jnp.float32) * 255.0
    r, g, b = img[:, 0:1], img[:, 1:2], img[:, 2:3]     # (N,1,H,W)
    mx = jnp.max(img, axis=1, keepdims=True)
    mn = jnp.min(img, axis=1, keepdims=True)
    am = jnp.argmax(img, axis=1)                        # (N,H,W), first-max ties
    mm = mx - mn + eps
    h1 = 60.0 * (g - b) / mm
    h2 = 60.0 * (b - r) / mm + 120.0
    h3 = 60.0 * (r - g) / mm + 240.0
    hs0 = jnp.stack((h1, h2, h3), axis=1)[0, :, 0]      # (3,H,W), batch-0 values
    hh, ww = hs0.shape[1], hs0.shape[2]
    yy = jnp.arange(hh)[None, :, None]
    xx = jnp.arange(ww)[None, None, :]
    h = hs0[am, yy, xx]                                 # (N,H,W)
    return h[:, None]                                   # (N,1,H,W)


def _l_hue_ref(haze, dehaze, batch_size):
    h1 = _hue_ref(haze)
    h2 = _hue_ref(dehaze)
    n, _, hh, ww = h1.shape
    bs = batch_size
    p1 = h1.reshape(n, 1, hh // bs, bs, ww // bs, bs).mean(axis=(3, 5))
    p2 = h2.reshape(n, 1, hh // bs, bs, ww // bs, bs).mean(axis=(3, 5))
    return jnp.mean((p1 - p2) ** 2) / 3600.0


if __name__ == "__main__":
    key = jax.random.PRNGKey(0)
    k1, k2 = jax.random.split(key)
    N, C, H, W = 2, 3, 16, 16
    haze = jax.random.uniform(k1, (N, C, H, W), dtype=jnp.float32)
    dehaze = jax.random.uniform(k2, (N, C, H, W), dtype=jnp.float32)

    k = l_hue(haze, dehaze, batch_size=N)   # AvgPool2d(batch_size) as in module
    jax.block_until_ready(k)

    k_ref = _l_hue_ref(haze, dehaze, batch_size=N)
    np.testing.assert_allclose(np.asarray(k), np.asarray(k_ref),
                               rtol=1e-3, atol=1e-5)
    print("KERNEL_OK")
</pallas_src>

<mosaic_0001>
module attributes {stable_mosaic.version = 11 : i64} {
  func.func @_lhue_kernel(%arg0: i32, %arg1: i32, %arg2: i32, %arg3: memref<1x3x8x16xf32, #tpu.memory_space<vmem>>, %arg4: memref<1x3x8x16xf32, #tpu.memory_space<vmem>>, %arg5: memref<4x8xf32, #tpu.memory_space<vmem>>, %arg6: memref<16x8xf32, #tpu.memory_space<vmem>>, %arg7: memref<1x8x128xf32, #tpu.memory_space<vmem>>, %arg8: memref<3x8x16xf32, #tpu.memory_space<vmem>>, %arg9: memref<3x8x16xf32, #tpu.memory_space<vmem>>, %arg10: memref<4x8xf32, #tpu.memory_space<vmem>>) attributes {dimension_semantics = [#tpu.dimension_semantics<parallel>, #tpu.dimension_semantics<arbitrary>, #tpu.dimension_semantics<arbitrary>], iteration_bounds = array<i64: 2, 1, 2>, scalar_prefetch = 0 : i64, scratch_operands = 3 : i64, tpu.core_type = #tpu.core_type<tc>, window_params = [{transform_indices = @transform_0, window_bounds = array<i64: 1, 3, 8, 16>}, {transform_indices = @transform_1, window_bounds = array<i64: 1, 3, 8, 16>}, {pipeline_mode = #tpu.pipeline_mode<synchronous>, transform_indices = @transform_2, window_bounds = array<i64: 4, 8>}, {pipeline_mode = #tpu.pipeline_mode<synchronous>, transform_indices = @transform_3, window_bounds = array<i64: 16, 8>}, {transform_indices = @transform_4, window_bounds = array<i64: 1, 8, 128>}]} {
    %c0_i32 = arith.constant 0 : i32
    %0 = arith.cmpi eq, %arg1, %c0_i32 : i32
    %c0_i32_0 = arith.constant 0 : i32
    %1 = arith.cmpi eq, %arg2, %c0_i32_0 : i32
    %2 = arith.andi %0, %1 : i1
    %3 = arith.extui %2 : i1 to i32
    %c0_i32_1 = arith.constant 0 : i32
    %4 = arith.cmpi ne, %3, %c0_i32_1 : i32
    scf.if %4 {
      %cst_40 = arith.constant 0.000000e+00 : f32
      %66 = vector.broadcast %cst_40 : f32 to vector<4x8xf32>
      %c0_41 = arith.constant 0 : index
      %c0_42 = arith.constant 0 : index
      %67 = vector.load %arg10[%c0_41, %c0_42] : memref<4x8xf32, #tpu.memory_space<vmem>>, vector<4x8xf32>
      tpu.vector_store %arg10[%c0_41, %c0_42], %66 {strides = array<i32>} : memref<4x8xf32, #tpu.memory_space<vmem>>, vector<4x8xf32>,
    } else {
    }
    %c0 = arith.constant 0 : index
    %c0_2 = arith.constant 0 : index
    %c0_3 = arith.constant 0 : index
    %c0_4 = arith.constant 0 : index
    %5 = vector.load %arg3[%c0, %c0_2, %c0_3, %c0_4] : memref<1x3x8x16xf32, #tpu.memory_space<vmem>>, vector<1x3x8x16xf32>
    %6 = vector.shape_cast %5 : vector<1x3x8x16xf32> to vector<3x8x16xf32>
    %c0_5 = arith.constant 0 : index
    %c0_6 = arith.constant 0 : index
    %c0_7 = arith.constant 0 : index
    %c0_8 = arith.constant 0 : index
    %7 = vector.load %arg4[%c0_5, %c0_6, %c0_7, %c0_8] : memref<1x3x8x16xf32, #tpu.memory_space<vmem>>, vector<1x3x8x16xf32>
    %8 = vector.shape_cast %7 : vector<1x3x8x16xf32> to vector<3x8x16xf32>
    %c0_i32_9 = arith.constant 0 : i32
    %9 = arith.cmpi eq, %arg2, %c0_i32_9 : i32
    %10 = arith.extui %9 : i1 to i32
    %c0_i32_10 = arith.constant 0 : i32
    %11 = arith.cmpi ne, %10, %c0_i32_10 : i32
    scf.if %11 {
      %66 = vector.extract_strided_slice %6 {offsets = [0, 0, 0], sizes = [1, 8, 16], strides = [1, 1, 1]} : vector<3x8x16xf32> to vector<1x8x16xf32>
      %67 = vector.shape_cast %66 : vector<1x8x16xf32> to vector<8x16xf32>
      %68 = vector.extract_strided_slice %6 {offsets = [1, 0, 0], sizes = [1, 8, 16], strides = [1, 1, 1]} : vector<3x8x16xf32> to vector<1x8x16xf32>
      %69 = vector.shape_cast %68 : vector<1x8x16xf32> to vector<8x16xf32>
      %70 = vector.extract_strided_slice %6 {offsets = [2, 0, 0], sizes = [1, 8, 16], strides = [1, 1, 1]} : vector<3x8x16xf32> to vector<1x8x16xf32>
      %71 = vector.shape_cast %70 : vector<1x8x16xf32> to vector<8x16xf32>
      %72 = arith.maximumf %67, %69 : vector<8x16xf32>
      %73 = arith.maximumf %72, %71 : vector<8x16xf32>
      %74 = arith.minimumf %67, %69 : vector<8x16xf32>
      %75 = arith.minimumf %74, %71 : vector<8x16xf32>
      %76 = arith.subf %73, %75 : vector<8x16xf32>
      %cst_40 = arith.constant 3.92156874E-13 : f32
      %77 = vector.broadcast %cst_40 : f32 to vector<8x16xf32>
      %78 = arith.addf %76, %77 : vector<8x16xf32>
      %cst_41 = arith.constant 6.000000e+01 : f32
      %79 = vector.broadcast %cst_41 : f32 to vector<8x16xf32>
      %80 = arith.divf %79, %78 : vector<8x16xf32>
      %81 = arith.subf %69, %71 : vector<8x16xf32>
      %82 = arith.mulf %81, %80 : vector<8x16xf32>
      %c0_42 = arith.constant 0 : index
      %c0_43 = arith.constant 0 : index
      %c0_44 = arith.constant 0 : index
      %83 = vector.load %arg8[%c0_42, %c0_43, %c0_44] : memref<3x8x16xf32, #tpu.memory_space<vmem>>, vector<1x8x16xf32>
      %84 = vector.shape_cast %83 : vector<1x8x16xf32> to vector<8x16xf32>
      %85 = vector.shape_cast %82 : vector<8x16xf32> to vector<1x8x16xf32>
      tpu.vector_store %arg8[%c0_42, %c0_43, %c0_44], %85 {strides = array<i32>} : memref<3x8x16xf32, #tpu.memory_space<vmem>>, vector<1x8x16xf32>,
      %86 = arith.subf %71, %67 : vector<8x16xf32>
      %87 = arith.mulf %86, %80 : vector<8x16xf32>
      %cst_45 = arith.constant 1.200000e+02 : f32
      %88 = vector.broadcast %cst_45 : f32 to vector<8x16xf32>
      %89 = arith.addf %87, %88 : vector<8x16xf32>
      %c1_46 = arith.constant 1 : index
      %c0_47 = arith.constant 0 : index
      %c0_48 = arith.constant 0 : index
      %90 = vector.load %arg8[%c1_46, %c0_47, %c0_48] : memref<3x8x16xf32, #tpu.memory_space<vmem>>, vector<1x8x16xf32>
      %91 = vector.shape_cast %90 : vector<1x8x16xf32> to vector<8x16xf32>
      %92 = vector.shape_cast %89 : vector<8x16xf32> to vector<1x8x16xf32>
      tpu.vector_store %arg8[%c1_46, %c0_47, %c0_48], %92 {strides = array<i32>} : memref<3x8x16xf32, #tpu.memory_space<vmem>>, vector<1x8x16xf32>,
      %93 = arith.subf %67, %69 : vector<8x16xf32>
      %94 = arith.mulf %93, %80 : vector<8x16xf32>
      %cst_49 = arith.constant 2.400000e+02 : f32
      %95 = vector.broadcast %cst_49 : f32 to vector<8x16xf32>
      %96 = arith.addf %94, %95 : vector<8x16xf32>
      %c2_50 = arith.constant 2 : index
      %c0_51 = arith.constant 0 : index
      %c0_52 = arith.constant 0 : index
      %97 = vector.load %arg8[%c2_50, %c0_51, %c0_52] : memref<3x8x16xf32, #tpu.memory_space<vmem>>, vector<1x8x16xf32>
      %98 = vector.shape_cast %97 : vector<1x8x16xf32> to vector<8x16xf32>
      %99 = vector.shape_cast %96 : vector<8x16xf32> to vector<1x8x16xf32>
      tpu.vector_store %arg8[%c2_50, %c0_51, %c0_52], %99 {strides = array<i32>} : memref<3x8x16xf32, #tpu.memory_space<vmem>>, vector<1x8x16xf32>,
      %100 = vector.extract_strided_slice %8 {offsets = [0, 0, 0], sizes = [1, 8, 16], strides = [1, 1, 1]} : vector<3x8x16xf32> to vector<1x8x16xf32>
      %101 = vector.shape_cast %100 : vector<1x8x16xf32> to vector<8x16xf32>
      %102 = vector.extract_strided_slice %8 {offsets = [1, 0, 0], sizes = [1, 8, 16], strides = [1, 1, 1]} : vector<3x8x16xf32> to vector<1x8x16xf32>
      %103 = vector.shape_cast %102 : vector<1x8x16xf32> to vector<8x16xf32>
      %104 = vector.extract_strided_slice %8 {offsets = [2, 0, 0], sizes = [1, 8, 16], strides = [1, 1, 1]} : vector<3x8x16xf32> to vector<1x8x16xf32>
      %105 = vector.shape_cast %104 : vector<1x8x16xf32> to vector<8x16xf32>
      %106 = arith.maximumf %101, %103 : vector<8x16xf32>
      %107 = arith.maximumf %106, %105 : vector<8x16xf32>
      %108 = arith.minimumf %101, %103 : vector<8x16xf32>
      %109 = arith.minimumf %108, %105 : vector<8x16xf32>
      %110 = arith.subf %107, %109 : vector<8x16xf32>
      %cst_53 = arith.constant 3.92156874E-13 : f32
      %111 = vector.broadcast %cst_53 : f32 to vector<8x16xf32>
      %112 = arith.addf %110, %111 : vector<8x16xf32>
      %cst_54 = arith.constant 6.000000e+01 : f32
      %113 = vector.broadcast %cst_54 : f32 to vector<8x16xf32>
      %114 = arith.divf %113, %112 : vector<8x16xf32>
      %115 = arith.subf %103, %105 : vector<8x16xf32>
      %116 = arith.mulf %115, %114 : vector<8x16xf32>
      %c0_55 = arith.constant 0 : index
      %c0_56 = arith.constant 0 : index
      %c0_57 = arith.constant 0 : index
      %117 = vector.load %arg9[%c0_55, %c0_56, %c0_57] : memref<3x8x16xf32, #tpu.memory_space<vmem>>, vector<1x8x16xf32>
      %118 = vector.shape_cast %117 : vector<1x8x16xf32> to vector<8x16xf32>
      %119 = vector.shape_cast %116 : vector<8x16xf32> to vector<1x8x16xf32>
      tpu.vector_store %arg9[%c0_55, %c0_56, %c0_57], %119 {strides = array<i32>} : memref<3x8x16xf32, #tpu.memory_space<vmem>>, vector<1x8x16xf32>,
      %120 = arith.subf %105, %101 : vector<8x16xf32>
      %121 = arith.mulf %120, %114 : vector<8x16xf32>
      %cst_58 = arith.constant 1.200000e+02 : f32
      %122 = vector.broadcast %cst_58 : f32 to vector<8x16xf32>
      %123 = arith.addf %121, %122 : vector<8x16xf32>
      %c1_59 = arith.constant 1 : index
      %c0_60 = arith.constant 0 : index
      %c0_61 = arith.constant 0 : index
      %124 = vector.load %arg9[%c1_59, %c0_60, %c0_61] : memref<3x8x16xf32, #tpu.memory_space<vmem>>, vector<1x8x16xf32>
      %125 = vector.shape_cast %124 : vector<1x8x16xf32> to vector<8x16xf32>
      %126 = vector.shape_cast %123 : vector<8x16xf32> to vector<1x8x16xf32>
      tpu.vector_store %arg9[%c1_59, %c0_60, %c0_61], %126 {strides = array<i32>} : memref<3x8x16xf32, #tpu.memory_space<vmem>>, vector<1x8x16xf32>,
      %127 = arith.subf %101, %103 : vector<8x16xf32>
      %128 = arith.mulf %127, %114 : vector<8x16xf32>
      %cst_62 = arith.constant 2.400000e+02 : f32
      %129 = vector.broadcast %cst_62 : f32 to vector<8x16xf32>
      %130 = arith.addf %128, %129 : vector<8x16xf32>
      %c2_63 = arith.constant 2 : index
      %c0_64 = arith.constant 0 : index
      %c0_65 = arith.constant 0 : index
      %131 = vector.load %arg9[%c2_63, %c0_64, %c0_65] : memref<3x8x16xf32, #tpu.memory_space<vmem>>, vector<1x8x16xf32>
      %132 = vector.shape_cast %131 : vector<1x8x16xf32> to vector<8x16xf32>
      %133 = vector.shape_cast %130 : vector<8x16xf32> to vector<1x8x16xf32>
      tpu.vector_store %arg9[%c2_63, %c0_64, %c0_65], %133 {strides = array<i32>} : memref<3x8x16xf32, #tpu.memory_space<vmem>>, vector<1x8x16xf32>,
    } else {
    }
    %12 = vector.extract_strided_slice %6 {offsets = [0, 0, 0], sizes = [1, 8, 16], strides = [1, 1, 1]} : vector<3x8x16xf32> to vector<1x8x16xf32>
    %13 = vector.shape_cast %12 : vector<1x8x16xf32> to vector<8x16xf32>
    %14 = vector.extract_strided_slice %6 {offsets = [1, 0, 0], sizes = [1, 8, 16], strides = [1, 1, 1]} : vector<3x8x16xf32> to vector<1x8x16xf32>
    %15 = vector.shape_cast %14 : vector<1x8x16xf32> to vector<8x16xf32>
    %16 = vector.extract_strided_slice %6 {offsets = [2, 0, 0], sizes = [1, 8, 16], strides = [1, 1, 1]} : vector<3x8x16xf32> to vector<1x8x16xf32>
    %17 = vector.shape_cast %16 : vector<1x8x16xf32> to vector<8x16xf32>
    %18 = arith.cmpf oge, %13, %15 : vector<8x16xf32>
    %19 = arith.cmpf oge, %13, %17 : vector<8x16xf32>
    %20 = arith.andi %18, %19 : vector<8x16xi1>
    %cst = arith.constant dense<true> : vector<8x16xi1>
    %21 = arith.xori %20, %cst : vector<8x16xi1>
    %22 = arith.cmpf oge, %15, %17 : vector<8x16xf32>
    %23 = arith.andi %21, %22 : vector<8x16xi1>
    %c0_11 = arith.constant 0 : index
    %c0_12 = arith.constant 0 : index
    %c0_13 = arith.constant 0 : index
    %24 = vector.load %arg8[%c0_11, %c0_12, %c0_13] : memref<3x8x16xf32, #tpu.memory_space<vmem>>, vector<1x8x16xf32>
    %25 = vector.shape_cast %24 : vector<1x8x16xf32> to vector<8x16xf32>
    %c1 = arith.constant 1 : index
    %c0_14 = arith.constant 0 : index
    %c0_15 = arith.constant 0 : index
    %26 = vector.load %arg8[%c1, %c0_14, %c0_15] : memref<3x8x16xf32, #tpu.memory_space<vmem>>, vector<1x8x16xf32>
    %27 = vector.shape_cast %26 : vector<1x8x16xf32> to vector<8x16xf32>
    %c2 = arith.constant 2 : index
    %c0_16 = arith.constant 0 : index
    %c0_17 = arith.constant 0 : index
    %28 = vector.load %arg8[%c2, %c0_16, %c0_17] : memref<3x8x16xf32, #tpu.memory_space<vmem>>, vector<1x8x16xf32>
    %29 = vector.shape_cast %28 : vector<1x8x16xf32> to vector<8x16xf32>
    %30 = arith.select %23, %27, %29 : vector<8x16xi1>, vector<8x16xf32>
    %31 = arith.select %20, %25, %30 : vector<8x16xi1>, vector<8x16xf32>
    %32 = vector.extract_strided_slice %8 {offsets = [0, 0, 0], sizes = [1, 8, 16], strides = [1, 1, 1]} : vector<3x8x16xf32> to vector<1x8x16xf32>
    %33 = vector.shape_cast %32 : vector<1x8x16xf32> to vector<8x16xf32>
    %34 = vector.extract_strided_slice %8 {offsets = [1, 0, 0], sizes = [1, 8, 16], strides = [1, 1, 1]} : vector<3x8x16xf32> to vector<1x8x16xf32>
    %35 = vector.shape_cast %34 : vector<1x8x16xf32> to vector<8x16xf32>
    %36 = vector.extract_strided_slice %8 {offsets = [2, 0, 0], sizes = [1, 8, 16], strides = [1, 1, 1]} : vector<3x8x16xf32> to vector<1x8x16xf32>
    %37 = vector.shape_cast %36 : vector<1x8x16xf32> to vector<8x16xf32>
    %38 = arith.cmpf oge, %33, %35 : vector<8x16xf32>
    %39 = arith.cmpf oge, %33, %37 : vector<8x16xf32>
    %40 = arith.andi %38, %39 : vector<8x16xi1>
    %cst_18 = arith.constant dense<true> : vector<8x16xi1>
    %41 = arith.xori %40, %cst_18 : vector<8x16xi1>
    %42 = arith.cmpf oge, %35, %37 : vector<8x16xf32>
    %43 = arith.andi %41, %42 : vector<8x16xi1>
    %c0_19 = arith.constant 0 : index
    %c0_20 = arith.constant 0 : index
    %c0_21 = arith.constant 0 : index
    %44 = vector.load %arg9[%c0_19, %c0_20, %c0_21] : memref<3x8x16xf32, #tpu.memory_space<vmem>>, vector<1x8x16xf32>
    %45 = vector.shape_cast %44 : vector<1x8x16xf32> to vector<8x16xf32>
    %c1_22 = arith.constant 1 : index
    %c0_23 = arith.constant 0 : index
    %c0_24 = arith.constant 0 : index
    %46 = vector.load %arg9[%c1_22, %c0_23, %c0_24] : memref<3x8x16xf32, #tpu.memory_space<vmem>>, vector<1x8x16xf32>
    %47 = vector.shape_cast %46 : vector<1x8x16xf32> to vector<8x16xf32>
    %c2_25 = arith.constant 2 : index
    %c0_26 = arith.constant 0 : index
    %c0_27 = arith.constant 0 : index
    %48 = vector.load %arg9[%c2_25, %c0_26, %c0_27] : memref<3x8x16xf32, #tpu.memory_space<vmem>>, vector<1x8x16xf32>
    %49 = vector.shape_cast %48 : vector<1x8x16xf32> to vector<8x16xf32>
    %50 = arith.select %43, %47, %49 : vector<8x16xi1>, vector<8x16xf32>
    %51 = arith.select %40, %45, %50 : vector<8x16xi1>, vector<8x16xf32>
    %52 = arith.subf %31, %51 : vector<8x16xf32>
    %c0_28 = arith.constant 0 : index
    %c0_29 = arith.constant 0 : index
    %53 = vector.load %arg5[%c0_28, %c0_29] : memref<4x8xf32, #tpu.memory_space<vmem>>, vector<4x8xf32>
    %cst_30 = arith.constant dense<0.000000e+00> : vector<4x16xf32>
    %54 = tpu.matmul %53, %52, %cst_30 {dimension_numbers = #tpu.dot_dimension_numbers<[1], [0], [0], [1], [0, 0, 1, 1], [], []>, precision = #tpu.contract_precision<fp32>} : vector<4x8xf32>, vector<8x16xf32>, vector<4x16xf32> -> vector<4x16xf32>
    %c0_31 = arith.constant 0 : index
    %c0_32 = arith.constant 0 : index
    %55 = vector.load %arg6[%c0_31, %c0_32] : memref<16x8xf32, #tpu.memory_space<vmem>>, vector<16x8xf32>
    %cst_33 = arith.constant dense<0.000000e+00> : vector<4x8xf32>
    %56 = tpu.matmul %54, %55, %cst_33 {dimension_numbers = #tpu.dot_dimension_numbers<[1], [0], [0], [1], [0, 0, 1, 1], [], []>, precision = #tpu.contract_precision<fp32>} : vector<4x16xf32>, vector<16x8xf32>, vector<4x8xf32> -> vector<4x8xf32>
    %c0_34 = arith.constant 0 : index
    %c0_35 = arith.constant 0 : index
    %57 = vector.load %arg10[%c0_34, %c0_35] : memref<4x8xf32, #tpu.memory_space<vmem>>, vector<4x8xf32>
    %58 = arith.mulf %56, %56 : vector<4x8xf32>
    %59 = arith.addf %57, %58 : vector<4x8xf32>
    %c0_36 = arith.constant 0 : index
    %c0_37 = arith.constant 0 : index
    %60 = vector.load %arg10[%c0_36, %c0_37] : memref<4x8xf32, #tpu.memory_space<vmem>>, vector<4x8xf32>
    tpu.vector_store %arg10[%c0_36, %c0_37], %59 {strides = array<i32>} : memref<4x8xf32, #tpu.memory_space<vmem>>, vector<4x8xf32>,
    %c0_i32_38 = arith.constant 0 : i32
    %61 = arith.cmpi eq, %arg1, %c0_i32_38 : i32
    %c1_i32 = arith.constant 1 : i32
    %62 = arith.cmpi eq, %arg2, %c1_i32 : i32
    %63 = arith.andi %61, %62 : i1
    %64 = arith.extui %63 : i1 to i32
    %c0_i32_39 = arith.constant 0 : i32
    %65 = arith.cmpi ne, %64, %c0_i32_39 : i32
    scf.if %65 {
      %c0_40 = arith.constant 0 : index
      %c0_41 = arith.constant 0 : index
      %66 = vector.load %arg10[%c0_40, %c0_41] : memref<4x8xf32, #tpu.memory_space<vmem>>, vector<4x8xf32>
      %67 = vector.shape_cast %66 : vector<4x8xf32> to vector<1x4x8xf32>
      %cst_42 = arith.constant dense<0.000000e+00> : vector<1xf32>
      %68 = vector.multi_reduction <add>, %67, %cst_42 [1, 2] : vector<1x4x8xf32> to vector<1xf32>
      %69 = vector.shape_cast %68 : vector<1xf32> to vector<1x1x1xf32>
      %70 = vector.extract %69[0, 0, 0] : f32 from vector<1x1x1xf32>
      %cst_43 = arith.constant 2.17013894E-6 : f32
      %71 = arith.mulf %70, %cst_43 : f32
      %72 = vector.broadcast %71 : f32 to vector<8x128xf32>
      %c0_44 = arith.constant 0 : index
      %c0_45 = arith.constant 0 : index
      %c0_46 = arith.constant 0 : index
      %73 = vector.load %arg7[%c0_44, %c0_45, %c0_46] : memref<1x8x128xf32, #tpu.memory_space<vmem>>, vector<1x8x128xf32>
      %74 = vector.shape_cast %73 : vector<1x8x128xf32> to vector<8x128xf32>
      %75 = vector.shape_cast %72 : vector<8x128xf32> to vector<1x8x128xf32>
      tpu.vector_store %arg7[%c0_44, %c0_45, %c0_46], %75 {strides = array<i32>} : memref<1x8x128xf32, #tpu.memory_space<vmem>>, vector<1x8x128xf32>,
    } else {
    }
    return
  }
  func.func @transform_0(%arg0: i32, %arg1: i32, %arg2: i32) -> (i32, i32, i32, i32) {
    %c1_i32 = arith.constant 1 : i32
    %0 = arith.muli %arg0, %c1_i32 : i32
    %1 = arith.addi %0, %arg1 : i32
    %c0_i32 = arith.constant 0 : i32
    %c0_i32_0 = arith.constant 0 : i32
    %c0_i32_1 = arith.constant 0 : i32
    return %arg2, %c0_i32, %1, %c0_i32_0 : i32, i32, i32, i32
  }
  func.func @transform_1(%arg0: i32, %arg1: i32, %arg2: i32) -> (i32, i32, i32, i32) {
    %c1_i32 = arith.constant 1 : i32
    %0 = arith.muli %arg0, %c1_i32 : i32
    %1 = arith.addi %0, %arg1 : i32
    %c0_i32 = arith.constant 0 : i32
    %c0_i32_0 = arith.constant 0 : i32
    %c0_i32_1 = arith.constant 0 : i32
    return %arg2, %c0_i32, %1, %c0_i32_0 : i32, i32, i32, i32
  }
  func.func @transform_2(%arg0: i32, %arg1: i32, %arg2: i32) -> (i32, i32) {
    %c0_i32 = arith.constant 0 : i32
    %c0_i32_0 = arith.constant 0 : i32
    %c0_i32_1 = arith.constant 0 : i32
    return %c0_i32, %c0_i32_0 : i32, i32
  }
  func.func @transform_3(%arg0: i32, %arg1: i32, %arg2: i32) -> (i32, i32) {
    %c0_i32 = arith.constant 0 : i32
    %c0_i32_0 = arith.constant 0 : i32
    %c0_i32_1 = arith.constant 0 : i32
    return %c0_i32, %c0_i32_0 : i32, i32
  }
  func.func @transform_4(%arg0: i32, %arg1: i32, %arg2: i32) -> (i32, i32, i32) {
    %c0_i32 = arith.constant 0 : i32
    %c0_i32_0 = arith.constant 0 : i32
    %c0_i32_1 = arith.constant 0 : i32
    return %arg0, %c0_i32, %c0_i32_0 : i32, i32, i32
  }
}

</mosaic_0001>

<llo_original>
// kernel: tpu_custom_call.1
$region0: #{tpu_custom_call.1}
  #allocation0 [shape = 'u32[]', space=smem, size = 0x4, offset = 0x4, fixed_abs, tag = 'smem constant byte address 0x4 - core index']
  #allocation1 [shape = 'u32[144,128]{1,0:T(1,128)}', space=vmem, size = 0x12000, scoped, tag = 'internal scratch']
  #allocation2 [shape = 'f32[3,8,16]{2,1,0:T(8,128)}', space=vmem, size = 0x3000, scoped, tag = 'scratch operand']
  #allocation3 [shape = 'f32[3,8,16]{2,1,0:T(8,128)}', space=vmem, size = 0x3000, scoped, tag = 'scratch operand']
  #allocation4 [shape = 'f32[4,8]{1,0:T(4,128)}', space=vmem, size = 0x800, scoped, tag = 'scratch operand']
  %s0 = inlined_call_operand.hbm [shape: f32[2,3,16,16], index: 0, kind: input, shape index: {}]
  %s1 = inlined_call_operand.hbm [shape: f32[2,3,16,16], index: 1, kind: input, shape index: {}]
  %s2 = inlined_call_operand.vmem [shape: f32[4,8], index: 2, kind: input, shape index: {}]
  %s3 = inlined_call_operand.vmem [shape: f32[16,8], index: 3, kind: input, shape index: {}]
  %s4 = inlined_call_operand.hbm [shape: f32[2,8,128], index: 4, kind: output, shape index: {}]
  %s5 = sld [smem:[#allocation0]]
  $region69: #{tpu_custom_call.1} parent=0
    _
  %s7 = ssub.s32 1, %s5
  %s8 = scalar_select 0, %s7, %s5
  $region1: #{tpu_custom_call.1} parent=0
    #allocation5 [shape = 'u8[24576]{0}', space=vmem, size = 0x6000, scoped, tag = 'input window, operand 0']
    #allocation6 [shape = 's32[2]{0}', space=sflag, size = 0x8, scoped, tag = 'scoped memory for tpu_custom_call.1']
    #allocation7 [shape = 's32[2]{0}', space=sflag, size = 0x8, scoped, tag = 'scoped memory for tpu_custom_call.1']
    #allocation8 [shape = 'u8[24576]{0}', space=vmem, size = 0x6000, scoped, tag = 'input window, operand 1']
    #allocation9 [shape = 's32[2]{0}', space=sflag, size = 0x8, scoped, tag = 'scoped memory for tpu_custom_call.1']
    #allocation10 [shape = 'u8[8192]{0}', space=vmem, size = 0x2000, scoped, tag = 'output window, operand 0']
    %9 = vsyncpa [#allocation6], 0
    %s10 = scalar_lea.sflag [#allocation6], 1
    %11 = vsyncpa %s10, 0
    %12 = vsyncpa [#allocation9], 0
    %s13 = scalar_lea.sflag [#allocation9], 1
    %14 = vsyncpa %s13, 0
    %15 = vsyncpa [#allocation7], 0
    %s16 = scalar_lea.sflag [#allocation7], 1
    %17 = vsyncpa %s16, 0
    loop: start=0, step=1, limit=6
    $region2: #{tpu_custom_call.1} parent=1 // loop_pre_header
      _
    $region3: #{tpu_custom_call.1} parent=1 // loop_header
      %s19 = sphi 0, %s23
      %p20 = scmp.ge.s32.totalorder %s19, 6
      %s26 = sphi 0, %s45
      %s27 = sphi 0, %s41
      %s28 = sphi 0, %s37
      %s29 = sphi 0, %s26
      %s30 = sphi 0, %s27
      %s31 = sphi 0, %s28
      %s32 = sphi 0, %s29
      %s33 = sphi 0, %s30
      %s34 = sphi 0, %s31
      %s52 = sphi 0, %s54
      %s55 = sphi 0, %s52
      %s56 = sphi 0, %s55
      %s72 = sphi 0, %s56
      %s82 = sphi 0, %s84
      %s85 = sphi 0, %s82
      %s86 = sphi 0, %s85
      %s102 = sphi 0, %s86
      %s106 = sphi 0, %s106
      %s108 = sphi 0, %s106
      %s109 = sphi 0, %s108
      %s123 = sphi 0, %s109
      %s127 = sphi 0, %s127
      %s129 = sphi 0, %s127
      %s130 = sphi 0, %s129
      %s144 = sphi 0, %s130
      %s150 = sphi 0, %s152
      %s153 = sphi 0, %s150
      %s154 = sphi 0, %s153
      %s170 = sphi 0, %s154
    $region4: #{tpu_custom_call.1} parent=1 // loop_header_branch
      %22 = sbr.rel (%p20) target = $region8
    $region5: #{tpu_custom_call.1} parent=1 // loop_body
      %s24 = ssub.s32 %s19, 1
      %s25 = ssub.s32 %s19, 2
      %s35 = sadd.s32 1, %s28
      %p36 = scmp.ge.s32.totalorder %s35, 2
      %s37 = scalar_select %p36, 0, %s35
      %s38 = sadd.s32 1, %s27
      %s39 = scalar_select %p36, %s38, %s27
      %p40 = scmp.ge.s32.totalorder %s39, 1
      %s41 = scalar_select %p40, 0, %s39
      %s42 = sadd.s32 1, %s26
      %s43 = scalar_select %p40, %s42, %s26
      %p44 = scmp.ge.s32.totalorder %s43, 2
      %s45 = scalar_select %p44, 0, %s43
      %s46 = sadd.s32 %s26, %s27
      %s47 = sadd.s32 %s45, %s41
      %s48 = ssub.s32 %s28, %s37
      %s49 = ssub.s32 %s46, %s47
      %s50 = sor.u32 %s48, %s49
      %p51 = scmp.eq.s32.totalorder %s50, 0
      %s53 = sadd.s32 %s52, 1
      %s54 = scalar_select %p51, %s52, %s53
      %p57 = pneg %p51
      %p58 = scmp.eq.s32.totalorder %s19, 3
      %p59 = por %p57, %p58
      %p60 = scmp.ne.s32.totalorder %s52, %s55
      %p61 = scmp.eq.s32.totalorder %s19, 0
      %p62 = por %p60, %p61
      %p63 = scmp.ne.s32.totalorder %s52, %s55
      %p64 = scmp.eq.s32.totalorder %s24, 3
      %p65 = por %p63, %p64
      %p66 = scmp.ne.s32.totalorder %s55, %s56
      %p67 = scmp.eq.s32.totalorder %s24, 0
      %p68 = por %p66, %p67
      %p69 = scmp.ne.s32.totalorder %s55, %s56
      %p70 = scmp.eq.s32.totalorder %s25, 3
      %p71 = por %p69, %p70
      %p73 = scmp.ne.s32.totalorder %s56, %s72
      %p74 = scmp.eq.s32.totalorder %s25, 0
      %p75 = por %p73, %p74
      %s76 = sadd.s32 %s26, %s27
      %s77 = sadd.s32 %s45, %s41
      %s78 = ssub.s32 %s28, %s37
      %s79 = ssub.s32 %s76, %s77
      %s80 = sor.u32 %s78, %s79
      %p81 = scmp.eq.s32.totalorder %s80, 0
      %s83 = sadd.s32 %s82, 1
      %s84 = scalar_select %p81, %s82, %s83
      %p87 = pneg %p81
      %p88 = scmp.eq.s32.totalorder %s19, 3
      %p89 = por %p87, %p88
      %p90 = scmp.ne.s32.totalorder %s82, %s85
      %p91 = scmp.eq.s32.totalorder %s19, 0
      %p92 = por %p90, %p91
      %p93 = scmp.ne.s32.totalorder %s82, %s85
      %p94 = scmp.eq.s32.totalorder %s24, 3
      %p95 = por %p93, %p94
      %p96 = scmp.ne.s32.totalorder %s85, %s86
      %p97 = scmp.eq.s32.totalorder %s24, 0
      %p98 = por %p96, %p97
      %p99 = scmp.ne.s32.totalorder %s85, %s86
      %p100 = scmp.eq.s32.totalorder %s25, 3
      %p101 = por %p99, %p100
      %p103 = scmp.ne.s32.totalorder %s86, %s102
      %p104 = scmp.eq.s32.totalorder %s25, 0
      %p105 = por %p103, %p104
      %s107 = sadd.s32 %s106, 1
      %p110 = scmp.eq.s32.totalorder %s19, 3
      %p111 = scmp.ne.s32.totalorder %s106, %s108
      %p112 = scmp.eq.s32.totalorder %s19, 0
      %p113 = por %p111, %p112
      %p114 = scmp.ne.s32.totalorder %s106, %s108
      %p115 = scmp.eq.s32.totalorder %s24, 3
      %p116 = por %p114, %p115
      %p117 = scmp.ne.s32.totalorder %s108, %s109
      %p118 = scmp.eq.s32.totalorder %s24, 0
      %p119 = por %p117, %p118
      %p120 = scmp.ne.s32.totalorder %s108, %s109
      %p121 = scmp.eq.s32.totalorder %s25, 3
      %p122 = por %p120, %p121
      %p124 = scmp.ne.s32.totalorder %s109, %s123
      %p125 = scmp.eq.s32.totalorder %s25, 0
      %p126 = por %p124, %p125
      %s128 = sadd.s32 %s127, 1
      %p131 = scmp.eq.s32.totalorder %s19, 3
      %p132 = scmp.ne.s32.totalorder %s127, %s129
      %p133 = scmp.eq.s32.totalorder %s19, 0
      %p134 = por %p132, %p133
      %p135 = scmp.ne.s32.totalorder %s127, %s129
      %p136 = scmp.eq.s32.totalorder %s24, 3
      %p137 = por %p135, %p136
      %p138 = scmp.ne.s32.totalorder %s129, %s130
      %p139 = scmp.eq.s32.totalorder %s24, 0
      %p140 = por %p138, %p139
      %p141 = scmp.ne.s32.totalorder %s129, %s130
      %p142 = scmp.eq.s32.totalorder %s25, 3
      %p143 = por %p141, %p142
      %p145 = scmp.ne.s32.totalorder %s130, %s144
      %p146 = scmp.eq.s32.totalorder %s25, 0
      %p147 = por %p145, %p146
      %s148 = ssub.s32 %s26, %s45
      %p149 = scmp.eq.s32.totalorder %s148, 0
      %s151 = sadd.s32 %s150, 1
      %s152 = scalar_select %p149, %s150, %s151
      %p155 = pneg %p149
      %p156 = scmp.eq.s32.totalorder %s19, 3
      %p157 = por %p155, %p156
      %p158 = scmp.ne.s32.totalorder %s150, %s153
      %p159 = scmp.eq.s32.totalorder %s19, 0
      %p160 = por %p158, %p159
      %p161 = scmp.ne.s32.totalorder %s150, %s153
      %p162 = scmp.eq.s32.totalorder %s24, 3
      %p163 = por %p161, %p162
      %p164 = scmp.ne.s32.totalorder %s153, %s154
      %p165 = scmp.eq.s32.totalorder %s24, 0
      %p166 = por %p164, %p165
      %p167 = scmp.ne.s32.totalorder %s153, %s154
      %p168 = scmp.eq.s32.totalorder %s25, 3
      %p169 = por %p167, %p168
      %p171 = scmp.ne.s32.totalorder %s154, %s170
      %p172 = scmp.eq.s32.totalorder %s25, 0
      %p173 = por %p171, %p172
      %p174 = scmp.le.s32.totalorder 1, %s19
      %p175 = scmp.lt.s32.totalorder %s19, 5
      %p176 = pnand %p174, %p175
      %p177 = pneg %p176
      // Predicated region
      $region9: #{tpu_custom_call.1} parent=5 // pred_check
        _
      $region10: #{tpu_custom_call.1} parent=5 // pred_check_branch
        %179 = sbr.rel (%p176) target = $region12
      $region11: #{tpu_custom_call.1} parent=5 // pred_region
        %s180 = ssub.s32 %s19, 1
        // Predicated region
        $region13: #{tpu_custom_call.1} parent=11 // pred_check
          %p181 = pneg %p119
        $region14: #{tpu_custom_call.1} parent=11 // pred_check_branch
          %183 = sbr.rel (%p181) target = $region16
        $region15: #{tpu_custom_call.1} parent=11 // pred_region
          _
        $region16: #{tpu_custom_call.1} parent=11 // pred_fallthru
          _
        // Predicated region
        $region17: #{tpu_custom_call.1} parent=11 // pred_check
          %p184 = pneg %p140
        $region18: #{tpu_custom_call.1} parent=11 // pred_check_branch
          %186 = sbr.rel (%p184) target = $region20
        $region19: #{tpu_custom_call.1} parent=11 // pred_region
          _
        $region20: #{tpu_custom_call.1} parent=11 // pred_fallthru
          _
      $region12: #{tpu_custom_call.1} parent=5 // pred_fallthru
        _
      %p187 = scmp.lt.s32.totalorder %s19, 4
      // Predicated region
      $region21: #{tpu_custom_call.1} parent=5 // pred_check
        %p188 = pneg %p187
      $region22: #{tpu_custom_call.1} parent=5 // pred_check_branch
        %190 = sbr.rel (%p188) target = $region24
      $region23: #{tpu_custom_call.1} parent=5 // pred_region
        // Predicated region
        $region25: #{tpu_custom_call.1} parent=23 // pred_check
          %p191 = pneg %p62
        $region26: #{tpu_custom_call.1} parent=23 // pred_check_branch
          %193 = sbr.rel (%p191) target = $region28
        $region27: #{tpu_custom_call.1} parent=23 // pred_region
          %s194 = sand.u32 %s52, 1
          %s195 = scalar_lea.sflag [#allocation6], %s194
          %s196 = sand.u32 %s52, 1
          %s197 = smul.addr %s196, 24
          %s198 = scalar_lea.vmem [#allocation5], %s197
          %s199 = sadd.s32 %s26, %s27
          %s201 = ssub.s32 384, 384
          %202 = vsyncadd %s195, %s201
          %s203 = smul.addr %s28, 6
          %s204 = sadd.s32 %s199, %s203
          %s205 = smul.addr %s204, 128
          %s206 = scalar_lea.hbm %s0, %s205
          %s207 = sshll.u32 %s198, 4
          %s208 = int_to_ptr.vmem [resolvable:$true] %s207
          %213 = dma.hbm_to_vmem [thread:$0]  %s206, 384, %s208, %s195, 256, 128, 8
        $region28: #{tpu_custom_call.1} parent=23 // pred_fallthru
          _
        // Predicated region
        $region29: #{tpu_custom_call.1} parent=23 // pred_check
          %p214 = pneg %p92
        $region30: #{tpu_custom_call.1} parent=23 // pred_check_branch
          %216 = sbr.rel (%p214) target = $region32
        $region31: #{tpu_custom_call.1} parent=23 // pred_region
          %s217 = sand.u32 %s82, 1
          %s218 = scalar_lea.sflag [#allocation9], %s217
          %s219 = sand.u32 %s82, 1
          %s220 = smul.addr %s219, 24
          %s221 = scalar_lea.vmem [#allocation8], %s220
          %s222 = sadd.s32 %s26, %s27
          %s224 = ssub.s32 384, 384
          %225 = vsyncadd %s218, %s224
          %s226 = smul.addr %s28, 6
          %s227 = sadd.s32 %s222, %s226
          %s228 = smul.addr %s227, 128
          %s229 = scalar_lea.hbm %s1, %s228
          %s230 = sshll.u32 %s221, 4
          %s231 = int_to_ptr.vmem [resolvable:$true] %s230
          %236 = dma.hbm_to_vmem [thread:$0]  %s229, 384, %s231, %s218, 256, 128, 8
        $region32: #{tpu_custom_call.1} parent=23 // pred_fallthru
          _
      $region24: #{tpu_custom_call.1} parent=5 // pred_fallthru
        _
      %p237 = scmp.le.s32.totalorder 1, %s19
      %p238 = scmp.lt.s32.totalorder %s19, 5
      %p239 = pnand %p237, %p238
      %p240 = pneg %p239
      // Predicated region
      $region33: #{tpu_custom_call.1} parent=5 // pred_check
        _
      $region34: #{tpu_custom_call.1} parent=5 // pred_check_branch
        %242 = sbr.rel (%p239) target = $region36
      $region35: #{tpu_custom_call.1} parent=5 // pred_region
        %s243 = ssub.s32 %s19, 1
        %s244 = sand.u32 %s55, 1
        %s245 = scalar_lea.sflag [#allocation6], %s244
        %s246 = sand.u32 %s55, 1
        %s247 = smul.addr %s246, 24
        %s248 = scalar_lea.vmem [#allocation5], %s247
        // Predicated region
        $region37: #{tpu_custom_call.1} parent=35 // pred_check
          %p249 = pneg %p68
        $region38: #{tpu_custom_call.1} parent=35 // pred_check_branch
          %251 = sbr.rel (%p249) target = $region40
        $region39: #{tpu_custom_call.1} parent=35 // pred_region
          %252 = dma.done %s245, 384
        $region40: #{tpu_custom_call.1} parent=35 // pred_fallthru
          _
        %s253 = sand.u32 %s85, 1
        %s254 = scalar_lea.sflag [#allocation9], %s253
        %s255 = sand.u32 %s85, 1
        %s256 = smul.addr %s255, 24
        %s257 = scalar_lea.vmem [#allocation8], %s256
        // Predicated region
        $region41: #{tpu_custom_call.1} parent=35 // pred_check
          %p258 = pneg %p98
        $region42: #{tpu_custom_call.1} parent=35 // pred_check_branch
          %260 = sbr.rel (%p258) target = $region44
        $region43: #{tpu_custom_call.1} parent=35 // pred_region
          %261 = dma.done %s254, 384
        $region44: #{tpu_custom_call.1} parent=35 // pred_fallthru
          _
        %s262 = sand.u32 %s55, 1
        %s263 = scalar_lea.sflag [#allocation6], %s262
        %s264 = sand.u32 %s55, 1
        %s265 = smul.addr %s264, 24
        %s266 = scalar_lea.vmem [#allocation5], %s265
        %p267 = pneg %p68
        %p268 = pneg %p65
        %s269 = sand.u32 %s85, 1
        %s270 = scalar_lea.sflag [#allocation9], %s269
        %s271 = sand.u32 %s85, 1
        %s272 = smul.addr %s271, 24
        %s273 = scalar_lea.vmem [#allocation8], %s272
        %p274 = pneg %p98
        %p275 = pneg %p95
        %p276 = pneg %p119
        %p277 = pneg %p116
        %p278 = pneg %p140
        %p279 = pneg %p137
        %p280 = pneg %p166
        %p281 = pneg %p163
        %s282 = sand.u32 %s153, 1
        %s283 = scalar_lea.sflag [#allocation7], %s282
        %s284 = sand.u32 %s153, 1
        %s285 = smul.addr %s284, 8
        %s286 = scalar_lea.vmem [#allocation10], %s285
        %s287 = sadd.s32 %s29, %s30
        %s288 = sadd.s32 %s29, %s30
        %p289 = scmp.eq.s32.totalorder %s30, 0
        %p290 = scmp.eq.s32.totalorder %s31, 0
        %p291 = pnand %p289, %p290
        %p292 = pneg %p291
        // Predicated region
        $region45: #{tpu_custom_call.1} parent=35 // pred_check
          _
        $region46: #{tpu_custom_call.1} parent=35 // pred_check_branch
          %294 = sbr.rel (%p291) target = $region48
        $region47: #{tpu_custom_call.1} parent=35 // pred_region
          %vm295 = vcmask 60416
          %296 = vst.msk [vmem:[#allocation4] sm:$0xf] %vm295, 0.0
        $region48: #{tpu_custom_call.1} parent=35 // pred_fallthru
          _
        %v297 = vld [vmem:[%s248] sm:$0xff]
        %v298 = vld [vmem:[%s248 + $0x8] sm:$0xff]
        %v299 = vld [vmem:[%s248 + $0x10] sm:$0xff]
        %v300 = vld [vmem:[%s257] sm:$0xff]
        %v301 = vld [vmem:[%s257 + $0x8] sm:$0xff]
        %v302 = vld [vmem:[%s257 + $0x10] sm:$0xff]
        // Predicated region
        $region49: #{tpu_custom_call.1} parent=35 // pred_check
          %p303 = pneg %p290
        $region50: #{tpu_custom_call.1} parent=35 // pred_check_branch
          %305 = sbr.rel (%p303) target = $region52
        $region51: #{tpu_custom_call.1} parent=35 // pred_region
          %v306 = vmax.f32 %v297, %v298
          %v307 = vmax.f32 %v306, %v299
          %v308 = vmin.f32 %v297, %v298
          %v309 = vmin.f32 %v308, %v299
          %v310 = vsub.f32 %v307, %v309
          %v311 = vadd.f32 %v310, 3.9215687e-13
          %v312 = vrcp.pop %v311
          %v313 = vmul.f32 60.0, %v312
          %v314 = vsub.f32 %v298, %v299
          %v315 = vmul.f32 %v314, %v313
          %vm316 = vcmask 130048
          %317 = vst.msk [vmem:[#allocation2] sm:$0xff] %vm316, %v315
          %v318 = vsub.f32 %v299, %v297
          %v319 = vmul.f32 %v318, %v313
          %v320 = vadd.f32 %v319, 120.0
          %s321 = scalar_lea.vmem [#allocation2], 8
          %322 = vst.msk [vmem:[%s321] sm:$0xff] %vm316, %v320
          %v323 = vsub.f32 %v297, %v298
          %v324 = vmul.f32 %v323, %v313
          %v325 = vadd.f32 %v324, 240.0
          %s326 = scalar_lea.vmem [#allocation2], 16
          %327 = vst.msk [vmem:[%s326] sm:$0xff] %vm316, %v325
          %v328 = vmax.f32 %v300, %v301
          %v329 = vmax.f32 %v328, %v302
          %v330 = vmin.f32 %v300, %v301
          %v331 = vmin.f32 %v330, %v302
          %v332 = vsub.f32 %v329, %v331
          %v333 = vadd.f32 %v332, 3.9215687e-13
          %v334 = vrcp.pop %v333
          %v335 = vmul.f32 60.0, %v334
          %v336 = vsub.f32 %v301, %v302
          %v337 = vmul.f32 %v336, %v335
          %338 = vst.msk [vmem:[#allocation3] sm:$0xff] %vm316, %v337
          %v339 = vsub.f32 %v302, %v300
          %v340 = vmul.f32 %v339, %v335
          %v341 = vadd.f32 %v340, 120.0
          %s342 = scalar_lea.vmem [#allocation3], 8
          %343 = vst.msk [vmem:[%s342] sm:$0xff] %vm316, %v341
          %v344 = vsub.f32 %v300, %v301
          %v345 = vmul.f32 %v344, %v335
          %v346 = vadd.f32 %v345, 240.0
          %s347 = scalar_lea.vmem [#allocation3], 16
          %348 = vst.msk [vmem:[%s347] sm:$0xff] %vm316, %v346
        $region52: #{tpu_custom_call.1} parent=35 // pred_fallthru
          _
        %vm349 = vcmp.ge.f32.partialorder %v297, %v298
        %vm350 = vcmp.ge.f32.partialorder %v297, %v299
        %vm351 = vmand %vm349, %vm350
        %vm352 = vmxor %vm351, 1
        %vm353 = vcmp.ge.f32.partialorder %v298, %v299
        %vm354 = vmand %vm352, %vm353
        %v355 = vld [vmem:[#allocation2] sm:$0xff]
        %s356 = scalar_lea.vmem [#allocation2], 8
        %v357 = vld [vmem:[%s356] sm:$0xff]
        %s358 = scalar_lea.vmem [#allocation2], 16
        %v359 = vld [vmem:[%s358] sm:$0xff]
        %v360 = vsel %vm354, %v357, %v359
        %v361 = vsel %vm351, %v355, %v360
        %vm362 = vcmp.ge.f32.partialorder %v300, %v301
        %vm363 = vcmp.ge.f32.partialorder %v300, %v302
        %vm364 = vmand %vm362, %vm363
        %vm365 = vmxor %vm364, 1
        %vm366 = vcmp.ge.f32.partialorder %v301, %v302
        %vm367 = vmand %vm365, %vm366
        %v368 = vld [vmem:[#allocation3] sm:$0xff]
        %s369 = scalar_lea.vmem [#allocation3], 8
        %v370 = vld [vmem:[%s369] sm:$0xff]
        %s371 = scalar_lea.vmem [#allocation3], 16
        %v372 = vld [vmem:[%s371] sm:$0xff]
        %v373 = vsel %vm367, %v370, %v372
        %v374 = vsel %vm364, %v368, %v373
        %v375 = vsub.f32 %v361, %v374
        %v376 = vld [vmem:[%s2] sm:$0xf]
        %vm377 = vcmask 64512
        %v379 = vsel %vm377, %v376, 0
        %381 = vmatprep.subr.mxu0 0.0
        %382 = vmatpush1.msra.mxu0 0.0
        %383 = vmatprep.subr.mxu0 0.0
        %384 = vmatpush1.msra.mxu0 0.0
        %385 = vmatprep.subr.mxu0 0.0
        %386 = vmatpush1.msra.mxu0 0.0
        %387 = vmatprep.subr.mxu0 0.0
        %388 = vmatpush1.msra.mxu0 0.0
        %389 = vmatprep.subr.mxu0 0.0
        %390 = vmatpush1.msra.mxu0 0.0
        %391 = vmatprep.subr.mxu0 0.0
        %392 = vmatpush1.msra.mxu0 0.0
        %393 = vmatprep.subr.mxu0 0.0
        %394 = vmatpush1.msra.mxu0 0.0
        %395 = vmatprep.subr.mxu0 0.0
        %396 = vmatpush1.msra.mxu0 0.0
        %397 = vmatprep.subr.mxu0 0.0
        %398 = vmatpush1.msra.mxu0 0.0
        %399 = vmatprep.subr.mxu0 0.0
        %400 = vmatpush1.msra.mxu0 0.0
        %401 = vmatprep.subr.mxu0 0.0
        %402 = vmatpush1.msra.mxu0 0.0
        %403 = vmatprep.subr.mxu0 0.0
        %404 = vmatpush1.msra.mxu0 0.0
        %405 = vmatprep.subr.mxu0 0.0
        %406 = vmatpush1.msra.mxu0 0.0
        %407 = vmatprep.subr.mxu0 0.0
        %408 = vmatpush1.msra.mxu0 0.0
        %409 = vmatprep.subr.mxu0 0.0
        %410 = vmatpush1.msra.mxu0 0.0
        %411 = vmatprep.subr.mxu0 0.0
        %v412 = vand.u32 %v375, 4294901760
        %413 = vmatpush1.msra.mxu0 %v412
        %414 = vmatprep.subr.mxu0 0.0
        %415 = vmatpush2.msra.mxu0 0.0
        %416 = vmatprep.subr.mxu0 0.0
        %417 = vmatpush2.msra.mxu0 0.0
        %418 = vmatprep.subr.mxu0 0.0
        %419 = vmatpush2.msra.mxu0 0.0
        %420 = vmatprep.subr.mxu0 0.0
        %421 = vmatpush2.msra.mxu0 0.0
        %422 = vmatprep.subr.mxu0 0.0
        %423 = vmatpush2.msra.mxu0 0.0
        %424 = vmatprep.subr.mxu0 0.0
        %425 = vmatpush2.msra.mxu0 0.0
        %426 = vmatprep.subr.mxu0 0.0
        %427 = vmatpush2.msra.mxu0 0.0
        %428 = vmatprep.subr.mxu0 0.0
        %429 = vmatpush2.msra.mxu0 0.0
        %430 = vmatprep.subr.mxu0 0.0
        %431 = vmatpush2.msra.mxu0 0.0
        %432 = vmatprep.subr.mxu0 0.0
        %433 = vmatpush2.msra.mxu0 0.0
        %434 = vmatprep.subr.mxu0 0.0
        %435 = vmatpush2.msra.mxu0 0.0
        %436 = vmatprep.subr.mxu0 0.0
        %437 = vmatpush2.msra.mxu0 0.0
        %438 = vmatprep.subr.mxu0 0.0
        %439 = vmatpush2.msra.mxu0 0.0
        %440 = vmatprep.subr.mxu0 0.0
        %441 = vmatpush2.msra.mxu0 0.0
        %442 = vmatprep.subr.mxu0 0.0
        %443 = vmatpush2.msra.mxu0 0.0
        %444 = vmatprep.subr.mxu0 0.0
        %445 = vmatpush2.msra.mxu0 0.0
        %446 = vmatprep.mubr.f32.mxu0 0.0
        %v447 = vand.u32 %v379, 4294901760
        %v448 = vsub.f32 %v379, %v447
        %v449 = vand.u32 %v448, 4294901760
        %v450 = vsub.f32 %v448, %v449
        %v451 = vand.u32 %v450, 4294901760
        %452 = vmatmul.mubr.f32.gmra.mxu0 %v451
        %v453 = vpop.f32.mrf.mxu0
        %v454 = vadd.f32 0.0, %v453
        %v455 = vpop.f32.mrf.mxu0
        %456 = vdwg.mxu0
        %457 = vmatprep.subr.mxu0 0.0
        %458 = vmatpush1.msra.mxu0 0.0
        %459 = vmatprep.subr.mxu0 0.0
        %460 = vmatpush1.msra.mxu0 0.0
        %461 = vmatprep.subr.mxu0 0.0
        %462 = vmatpush1.msra.mxu0 0.0
        %463 = vmatprep.subr.mxu0 0.0
        %464 = vmatpush1.msra.mxu0 0.0
        %465 = vmatprep.subr.mxu0 0.0
        %466 = vmatpush1.msra.mxu0 0.0
        %467 = vmatprep.subr.mxu0 0.0
        %468 = vmatpush1.msra.mxu0 0.0
        %469 = vmatprep.subr.mxu0 0.0
        %470 = vmatpush1.msra.mxu0 0.0
        %471 = vmatprep.subr.mxu0 0.0
        %472 = vmatpush1.msra.mxu0 0.0
        %473 = vmatprep.subr.mxu0 0.0
        %474 = vmatpush1.msra.mxu0 0.0
        %475 = vmatprep.subr.mxu0 0.0
        %476 = vmatpush1.msra.mxu0 0.0
        %477 = vmatprep.subr.mxu0 0.0
        %478 = vmatpush1.msra.mxu0 0.0
        %479 = vmatprep.subr.mxu0 0.0
        %480 = vmatpush1.msra.mxu0 0.0
        %481 = vmatprep.subr.mxu0 0.0
        %482 = vmatpush1.msra.mxu0 0.0
        %483 = vmatprep.subr.mxu0 0.0
        %484 = vmatpush1.msra.mxu0 0.0
        %485 = vmatprep.subr.mxu0 0.0
        %486 = vmatpush1.msra.mxu0 0.0
        %487 = vmatprep.subr.mxu0 0.0
        %v488 = vand.u32 %v375, 4294901760
        %v489 = vsub.f32 %v375, %v488
        %v490 = vand.u32 %v489, 4294901760
        %v491 = vsub.f32 %v489, %v490
        %v492 = vand.u32 %v491, 4294901760
        %493 = vmatpush1.msra.mxu0 %v492
        %494 = vmatprep.subr.mxu0 0.0
        %495 = vmatpush2.msra.mxu0 0.0
        %496 = vmatprep.subr.mxu0 0.0
        %497 = vmatpush2.msra.mxu0 0.0
        %498 = vmatprep.subr.mxu0 0.0
        %499 = vmatpush2.msra.mxu0 0.0
        %500 = vmatprep.subr.mxu0 0.0
        %501 = vmatpush2.msra.mxu0 0.0
        %502 = vmatprep.subr.mxu0 0.0
        %503 = vmatpush2.msra.mxu0 0.0
        %504 = vmatprep.subr.mxu0 0.0
        %505 = vmatpush2.msra.mxu0 0.0
        %506 = vmatprep.subr.mxu0 0.0
        %507 = vmatpush2.msra.mxu0 0.0
        %508 = vmatprep.subr.mxu0 0.0
        %509 = vmatpush2.msra.mxu0 0.0
        %510 = vmatprep.subr.mxu0 0.0
        %511 = vmatpush2.msra.mxu0 0.0
        %512 = vmatprep.subr.mxu0 0.0
        %513 = vmatpush2.msra.mxu0 0.0
        %514 = vmatprep.subr.mxu0 0.0
        %515 = vmatpush2.msra.mxu0 0.0
        %516 = vmatprep.subr.mxu0 0.0
        %517 = vmatpush2.msra.mxu0 0.0
        %518 = vmatprep.subr.mxu0 0.0
        %519 = vmatpush2.msra.mxu0 0.0
        %520 = vmatprep.subr.mxu0 0.0
        %521 = vmatpush2.msra.mxu0 0.0
        %522 = vmatprep.subr.mxu0 0.0
        %523 = vmatpush2.msra.mxu0 0.0
        %524 = vmatprep.subr.mxu0 0.0
        %525 = vmatpush2.msra.mxu0 0.0
        %526 = vmatprep.mubr.f32.mxu0 0.0
        %v527 = vand.u32 %v379, 4294901760
        %528 = vmatmul.mubr.f32.gmra.mxu0 %v527
        %v529 = vpop.f32.mrf.mxu0
        %v530 = vadd.f32 %v454, %v529
        %v531 = vpop.f32.mrf.mxu0
        %532 = vdwg.mxu0
        %533 = vmatprep.subr.mxu0 0.0
        %534 = vmatpush1.msra.mxu0 0.0
        %535 = vmatprep.subr.mxu0 0.0
        %536 = vmatpush1.msra.mxu0 0.0
        %537 = vmatprep.subr.mxu0 0.0
        %538 = vmatpush1.msra.mxu0 0.0
        %539 = vmatprep.subr.mxu0 0.0
        %540 = vmatpush1.msra.mxu0 0.0
        %541 = vmatprep.subr.mxu0 0.0
        %542 = vmatpush1.msra.mxu0 0.0
        %543 = vmatprep.subr.mxu0 0.0
        %544 = vmatpush1.msra.mxu0 0.0
        %545 = vmatprep.subr.mxu0 0.0
        %546 = vmatpush1.msra.mxu0 0.0
        %547 = vmatprep.subr.mxu0 0.0
        %548 = vmatpush1.msra.mxu0 0.0
        %549 = vmatprep.subr.mxu0 0.0
        %550 = vmatpush1.msra.mxu0 0.0
        %551 = vmatprep.subr.mxu0 0.0
        %552 = vmatpush1.msra.mxu0 0.0
        %553 = vmatprep.subr.mxu0 0.0
        %554 = vmatpush1.msra.mxu0 0.0
        %555 = vmatprep.subr.mxu0 0.0
        %556 = vmatpush1.msra.mxu0 0.0
        %557 = vmatprep.subr.mxu0 0.0
        %558 = vmatpush1.msra.mxu0 0.0
        %559 = vmatprep.subr.mxu0 0.0
        %560 = vmatpush1.msra.mxu0 0.0
        %561 = vmatprep.subr.mxu0 0.0
        %562 = vmatpush1.msra.mxu0 0.0
        %563 = vmatprep.subr.mxu0 0.0
        %v564 = vand.u32 %v375, 4294901760
        %v565 = vsub.f32 %v375, %v564
        %566 = vmatpush1.msra.mxu0 %v565
        %567 = vmatprep.subr.mxu0 0.0
        %568 = vmatpush2.msra.mxu0 0.0
        %569 = vmatprep.subr.mxu0 0.0
        %570 = vmatpush2.msra.mxu0 0.0
        %571 = vmatprep.subr.mxu0 0.0
        %572 = vmatpush2.msra.mxu0 0.0
        %573 = vmatprep.subr.mxu0 0.0
        %574 = vmatpush2.msra.mxu0 0.0
        %575 = vmatprep.subr.mxu0 0.0
        %576 = vmatpush2.msra.mxu0 0.0
        %577 = vmatprep.subr.mxu0 0.0
        %578 = vmatpush2.msra.mxu0 0.0
        %579 = vmatprep.subr.mxu0 0.0
        %580 = vmatpush2.msra.mxu0 0.0
        %581 = vmatprep.subr.mxu0 0.0
        %582 = vmatpush2.msra.mxu0 0.0
        %583 = vmatprep.subr.mxu0 0.0
        %584 = vmatpush2.msra.mxu0 0.0
        %585 = vmatprep.subr.mxu0 0.0
        %586 = vmatpush2.msra.mxu0 0.0
        %587 = vmatprep.subr.mxu0 0.0
        %588 = vmatpush2.msra.mxu0 0.0
        %589 = vmatprep.subr.mxu0 0.0
        %590 = vmatpush2.msra.mxu0 0.0
        %591 = vmatprep.subr.mxu0 0.0
        %592 = vmatpush2.msra.mxu0 0.0
        %593 = vmatprep.subr.mxu0 0.0
        %594 = vmatpush2.msra.mxu0 0.0
        %595 = vmatprep.subr.mxu0 0.0
        %596 = vmatpush2.msra.mxu0 0.0
        %597 = vmatprep.subr.mxu0 0.0
        %598 = vmatpush2.msra.mxu0 0.0
        %599 = vmatprep.mubr.f32.mxu0 0.0
        %v600 = vand.u32 %v379, 4294901760
        %v601 = vsub.f32 %v379, %v600
        %602 = vmatmul.mubr.f32.gmra.mxu0 %v601
        %v603 = vpop.f32.mrf.mxu0
        %v604 = vadd.f32 %v530, %v603
        %v605 = vpop.f32.mrf.mxu0
        %606 = vdwg.mxu0
        %607 = vmatprep.subr.mxu0 0.0
        %608 = vmatpush1.msra.mxu0 0.0
        %609 = vmatprep.subr.mxu0 0.0
        %610 = vmatpush1.msra.mxu0 0.0
        %611 = vmatprep.subr.mxu0 0.0
        %612 = vmatpush1.msra.mxu0 0.0
        %613 = vmatprep.subr.mxu0 0.0
        %614 = vmatpush1.msra.mxu0 0.0
        %615 = vmatprep.subr.mxu0 0.0
        %616 = vmatpush1.msra.mxu0 0.0
        %617 = vmatprep.subr.mxu0 0.0
        %618 = vmatpush1.msra.mxu0 0.0
        %619 = vmatprep.subr.mxu0 0.0
        %620 = vmatpush1.msra.mxu0 0.0
        %621 = vmatprep.subr.mxu0 0.0
        %622 = vmatpush1.msra.mxu0 0.0
        %623 = vmatprep.subr.mxu0 0.0
        %624 = vmatpush1.msra.mxu0 0.0
        %625 = vmatprep.subr.mxu0 0.0
        %626 = vmatpush1.msra.mxu0 0.0
        %627 = vmatprep.subr.mxu0 0.0
        %628 = vmatpush1.msra.mxu0 0.0
        %629 = vmatprep.subr.mxu0 0.0
        %630 = vmatpush1.msra.mxu0 0.0
        %631 = vmatprep.subr.mxu0 0.0
        %632 = vmatpush1.msra.mxu0 0.0
        %633 = vmatprep.subr.mxu0 0.0
        %634 = vmatpush1.msra.mxu0 0.0
        %635 = vmatprep.subr.mxu0 0.0
        %636 = vmatpush1.msra.mxu0 0.0
        %637 = vmatprep.subr.mxu0 0.0
        %v638 = vand.u32 %v375, 4294901760
        %639 = vmatpush1.msra.mxu0 %v638
        %640 = vmatprep.subr.mxu0 0.0
        %641 = vmatpush2.msra.mxu0 0.0
        %642 = vmatprep.subr.mxu0 0.0
        %643 = vmatpush2.msra.mxu0 0.0
        %644 = vmatprep.subr.mxu0 0.0
        %645 = vmatpush2.msra.mxu0 0.0
        %646 = vmatprep.subr.mxu0 0.0
        %647 = vmatpush2.msra.mxu0 0.0
        %648 = vmatprep.subr.mxu0 0.0
        %649 = vmatpush2.msra.mxu0 0.0
        %650 = vmatprep.subr.mxu0 0.0
        %651 = vmatpush2.msra.mxu0 0.0
        %652 = vmatprep.subr.mxu0 0.0
        %653 = vmatpush2.msra.mxu0 0.0
        %654 = vmatprep.subr.mxu0 0.0
        %655 = vmatpush2.msra.mxu0 0.0
        %656 = vmatprep.subr.mxu0 0.0
        %657 = vmatpush2.msra.mxu0 0.0
        %658 = vmatprep.subr.mxu0 0.0
        %659 = vmatpush2.msra.mxu0 0.0
        %660 = vmatprep.subr.mxu0 0.0
        %661 = vmatpush2.msra.mxu0 0.0
        %662 = vmatprep.subr.mxu0 0.0
        %663 = vmatpush2.msra.mxu0 0.0
        %664 = vmatprep.subr.mxu0 0.0
        %665 = vmatpush2.msra.mxu0 0.0
        %666 = vmatprep.subr.mxu0 0.0
        %667 = vmatpush2.msra.mxu0 0.0
        %668 = vmatprep.subr.mxu0 0.0
        %669 = vmatpush2.msra.mxu0 0.0
        %670 = vmatprep.subr.mxu0 0.0
        %671 = vmatpush2.msra.mxu0 0.0
        %672 = vmatprep.mubr.f32.mxu0 0.0
        %v673 = vand.u32 %v379, 4294901760
        %v674 = vsub.f32 %v379, %v673
        %v675 = vand.u32 %v674, 4294901760
        %676 = vmatmul.mubr.f32.gmra.mxu0 %v675
        %v677 = vpop.f32.mrf.mxu0
        %v678 = vadd.f32 %v604, %v677
        %v679 = vpop.f32.mrf.mxu0
        %680 = vdwg.mxu0
        %681 = vmatprep.subr.mxu0 0.0
        %682 = vmatpush1.msra.mxu0 0.0
        %683 = vmatprep.subr.mxu0 0.0
        %684 = vmatpush1.msra.mxu0 0.0
        %685 = vmatprep.subr.mxu0 0.0
        %686 = vmatpush1.msra.mxu0 0.0
        %687 = vmatprep.subr.mxu0 0.0
        %688 = vmatpush1.msra.mxu0 0.0
        %689 = vmatprep.subr.mxu0 0.0
        %690 = vmatpush1.msra.mxu0 0.0
        %691 = vmatprep.subr.mxu0 0.0
        %692 = vmatpush1.msra.mxu0 0.0
        %693 = vmatprep.subr.mxu0 0.0
        %694 = vmatpush1.msra.mxu0 0.0
        %695 = vmatprep.subr.mxu0 0.0
        %696 = vmatpush1.msra.mxu0 0.0
        %697 = vmatprep.subr.mxu0 0.0
        %698 = vmatpush1.msra.mxu0 0.0
        %699 = vmatprep.subr.mxu0 0.0
        %700 = vmatpush1.msra.mxu0 0.0
        %701 = vmatprep.subr.mxu0 0.0
        %702 = vmatpush1.msra.mxu0 0.0
        %703 = vmatprep.subr.mxu0 0.0
        %704 = vmatpush1.msra.mxu0 0.0
        %705 = vmatprep.subr.mxu0 0.0
        %706 = vmatpush1.msra.mxu0 0.0
        %707 = vmatprep.subr.mxu0 0.0
        %708 = vmatpush1.msra.mxu0 0.0
        %709 = vmatprep.subr.mxu0 0.0
        %710 = vmatpush1.msra.mxu0 0.0
        %711 = vmatprep.subr.mxu0 0.0
        %v712 = vand.u32 %v375, 4294901760
        %v713 = vsub.f32 %v375, %v712
        %v714 = vand.u32 %v713, 4294901760
        %715 = vmatpush1.msra.mxu0 %v714
        %716 = vmatprep.subr.mxu0 0.0
        %717 = vmatpush2.msra.mxu0 0.0
        %718 = vmatprep.subr.mxu0 0.0
        %719 = vmatpush2.msra.mxu0 0.0
        %720 = vmatprep.subr.mxu0 0.0
        %721 = vmatpush2.msra.mxu0 0.0
        %722 = vmatprep.subr.mxu0 0.0
        %723 = vmatpush2.msra.mxu0 0.0
        %724 = vmatprep.subr.mxu0 0.0
        %725 = vmatpush2.msra.mxu0 0.0
        %726 = vmatprep.subr.mxu0 0.0
        %727 = vmatpush2.msra.mxu0 0.0
        %728 = vmatprep.subr.mxu0 0.0
        %729 = vmatpush2.msra.mxu0 0.0
        %730 = vmatprep.subr.mxu0 0.0
        %731 = vmatpush2.msra.mxu0 0.0
        %732 = vmatprep.subr.mxu0 0.0
        %733 = vmatpush2.msra.mxu0 0.0
        %734 = vmatprep.subr.mxu0 0.0
        %735 = vmatpush2.msra.mxu0 0.0
        %736 = vmatprep.subr.mxu0 0.0
        %737 = vmatpush2.msra.mxu0 0.0
        %738 = vmatprep.subr.mxu0 0.0
        %739 = vmatpush2.msra.mxu0 0.0
        %740 = vmatprep.subr.mxu0 0.0
        %741 = vmatpush2.msra.mxu0 0.0
        %742 = vmatprep.subr.mxu0 0.0
        %743 = vmatpush2.msra.mxu0 0.0
        %744 = vmatprep.subr.mxu0 0.0
        %745 = vmatpush2.msra.mxu0 0.0
        %746 = vmatprep.subr.mxu0 0.0
        %747 = vmatpush2.msra.mxu0 0.0
        %748 = vmatprep.mubr.f32.mxu0 0.0
        %v749 = vand.u32 %v379, 4294901760
        %750 = vmatmul.mubr.f32.gmra.mxu0 %v749
        %v751 = vpop.f32.mrf.mxu0
        %v752 = vadd.f32 %v678, %v751
        %v753 = vpop.f32.mrf.mxu0
        %754 = vdwg.mxu0
        %755 = vmatprep.subr.mxu0 0.0
        %756 = vmatpush1.msra.mxu0 0.0
        %757 = vmatprep.subr.mxu0 0.0
        %758 = vmatpush1.msra.mxu0 0.0
        %759 = vmatprep.subr.mxu0 0.0
        %760 = vmatpush1.msra.mxu0 0.0
        %761 = vmatprep.subr.mxu0 0.0
        %762 = vmatpush1.msra.mxu0 0.0
        %763 = vmatprep.subr.mxu0 0.0
        %764 = vmatpush1.msra.mxu0 0.0
        %765 = vmatprep.subr.mxu0 0.0
        %766 = vmatpush1.msra.mxu0 0.0
        %767 = vmatprep.subr.mxu0 0.0
        %768 = vmatpush1.msra.mxu0 0.0
        %769 = vmatprep.subr.mxu0 0.0
        %770 = vmatpush1.msra.mxu0 0.0
        %771 = vmatprep.subr.mxu0 0.0
        %772 = vmatpush1.msra.mxu0 0.0
        %773 = vmatprep.subr.mxu0 0.0
        %774 = vmatpush1.msra.mxu0 0.0
        %775 = vmatprep.subr.mxu0 0.0
        %776 = vmatpush1.msra.mxu0 0.0
        %777 = vmatprep.subr.mxu0 0.0
        %778 = vmatpush1.msra.mxu0 0.0
        %779 = vmatprep.subr.mxu0 0.0
        %780 = vmatpush1.msra.mxu0 0.0
        %781 = vmatprep.subr.mxu0 0.0
        %782 = vmatpush1.msra.mxu0 0.0
        %783 = vmatprep.subr.mxu0 0.0
        %784 = vmatpush1.msra.mxu0 0.0
        %785 = vmatprep.subr.mxu0 0.0
        %v786 = vand.u32 %v375, 4294901760
        %787 = vmatpush1.msra.mxu0 %v786
        %788 = vmatprep.subr.mxu0 0.0
        %789 = vmatpush2.msra.mxu0 0.0
        %790 = vmatprep.subr.mxu0 0.0
        %791 = vmatpush2.msra.mxu0 0.0
        %792 = vmatprep.subr.mxu0 0.0
        %793 = vmatpush2.msra.mxu0 0.0
        %794 = vmatprep.subr.mxu0 0.0
        %795 = vmatpush2.msra.mxu0 0.0
        %796 = vmatprep.subr.mxu0 0.0
        %797 = vmatpush2.msra.mxu0 0.0
        %798 = vmatprep.subr.mxu0 0.0
        %799 = vmatpush2.msra.mxu0 0.0
        %800 = vmatprep.subr.mxu0 0.0
        %801 = vmatpush2.msra.mxu0 0.0
        %802 = vmatprep.subr.mxu0 0.0
        %803 = vmatpush2.msra.mxu0 0.0
        %804 = vmatprep.subr.mxu0 0.0
        %805 = vmatpush2.msra.mxu0 0.0
        %806 = vmatprep.subr.mxu0 0.0
        %807 = vmatpush2.msra.mxu0 0.0
        %808 = vmatprep.subr.mxu0 0.0
        %809 = vmatpush2.msra.mxu0 0.0
        %810 = vmatprep.subr.mxu0 0.0
        %811 = vmatpush2.msra.mxu0 0.0
        %812 = vmatprep.subr.mxu0 0.0
        %813 = vmatpush2.msra.mxu0 0.0
        %814 = vmatprep.subr.mxu0 0.0
        %815 = vmatpush2.msra.mxu0 0.0
        %816 = vmatprep.subr.mxu0 0.0
        %817 = vmatpush2.msra.mxu0 0.0
        %818 = vmatprep.subr.mxu0 0.0
        %819 = vmatpush2.msra.mxu0 0.0
        %820 = vmatprep.mubr.f32.mxu0 0.0
        %v821 = vand.u32 %v379, 4294901760
        %822 = vmatmul.mubr.f32.gmra.mxu0 %v821
        %v823 = vpop.f32.mrf.mxu0
        %v824 = vadd.f32 %v752, %v823
        %v825 = vpop.f32.mrf.mxu0
        %826 = vdwg.mxu0
        %v827 = vld [vmem:[%s3] sm:$0xff]
        %v828 = vld [vmem:[%s3 + $0x8] sm:$0xff]
        %vm829 = vcmask 130048
        %v831 = vsel %vm829, %v824, 0
        %833 = vmatprep.subr.mxu0 0.0
        %834 = vmatpush1.msra.mxu0 0.0
        %835 = vmatprep.subr.mxu0 0.0
        %836 = vmatpush1.msra.mxu0 0.0
        %837 = vmatprep.subr.mxu0 0.0
        %838 = vmatpush1.msra.mxu0 0.0
        %839 = vmatprep.subr.mxu0 0.0
        %840 = vmatpush1.msra.mxu0 0.0
        %841 = vmatprep.subr.mxu0 0.0
        %842 = vmatpush1.msra.mxu0 0.0
        %843 = vmatprep.subr.mxu0 0.0
        %844 = vmatpush1.msra.mxu0 0.0
        %845 = vmatprep.subr.mxu0 0.0
        %846 = vmatpush1.msra.mxu0 0.0
        %847 = vmatprep.subr.mxu0 0.0
        %848 = vmatpush1.msra.mxu0 0.0
        %849 = vmatprep.subr.mxu0 0.0
        %850 = vmatpush1.msra.mxu0 0.0
        %851 = vmatprep.subr.mxu0 0.0
        %852 = vmatpush1.msra.mxu0 0.0
        %853 = vmatprep.subr.mxu0 0.0
        %854 = vmatpush1.msra.mxu0 0.0
        %855 = vmatprep.subr.mxu0 0.0
        %856 = vmatpush1.msra.mxu0 0.0
        %857 = vmatprep.subr.mxu0 0.0
        %858 = vmatpush1.msra.mxu0 0.0
        %859 = vmatprep.subr.mxu0 0.0
        %860 = vmatpush1.msra.mxu0 0.0
        %861 = vmatprep.subr.mxu0 0.0
        %v862 = vand.u32 %v828, 4294901760
        %863 = vmatpush1.msra.mxu0 %v862
        %864 = vmatprep.subr.mxu0 0.0
        %v865 = vand.u32 %v827, 4294901760
        %866 = vmatpush1.msra.mxu0 %v865
        %867 = vmatprep.subr.mxu0 0.0
        %868 = vmatpush2.msra.mxu0 0.0
        %869 = vmatprep.subr.mxu0 0.0
        %870 = vmatpush2.msra.mxu0 0.0
        %871 = vmatprep.subr.mxu0 0.0
        %872 = vmatpush2.msra.mxu0 0.0
        %873 = vmatprep.subr.mxu0 0.0
        %874 = vmatpush2.msra.mxu0 0.0
        %875 = vmatprep.subr.mxu0 0.0
        %876 = vmatpush2.msra.mxu0 0.0
        %877 = vmatprep.subr.mxu0 0.0
        %878 = vmatpush2.msra.mxu0 0.0
        %879 = vmatprep.subr.mxu0 0.0
        %880 = vmatpush2.msra.mxu0 0.0
        %881 = vmatprep.subr.mxu0 0.0
        %882 = vmatpush2.msra.mxu0 0.0
        %883 = vmatprep.subr.mxu0 0.0
        %884 = vmatpush2.msra.mxu0 0.0
        %885 = vmatprep.subr.mxu0 0.0
        %886 = vmatpush2.msra.mxu0 0.0
        %887 = vmatprep.subr.mxu0 0.0
        %888 = vmatpush2.msra.mxu0 0.0
        %889 = vmatprep.subr.mxu0 0.0
        %890 = vmatpush2.msra.mxu0 0.0
        %891 = vmatprep.subr.mxu0 0.0
        %892 = vmatpush2.msra.mxu0 0.0
        %893 = vmatprep.subr.mxu0 0.0
        %894 = vmatpush2.msra.mxu0 0.0
        %895 = vmatprep.subr.mxu0 0.0
        %896 = vmatpush2.msra.mxu0 0.0
        %897 = vmatprep.subr.mxu0 0.0
        %898 = vmatpush2.msra.mxu0 0.0
        %899 = vmatprep.mubr.f32.mxu0 0.0
        %v900 = vand.u32 %v831, 4294901760
        %v901 = vsub.f32 %v831, %v900
        %v902 = vand.u32 %v901, 4294901760
        %v903 = vsub.f32 %v901, %v902
        %v904 = vand.u32 %v903, 4294901760
        %905 = vmatmul.mubr.f32.gmra.mxu0 %v904
        %v906 = vpop.f32.mrf.mxu0
        %v907 = vadd.f32 0.0, %v906
        %v908 = vpop.f32.mrf.mxu0
        %909 = vdwg.mxu0
        %910 = vmatprep.subr.mxu0 0.0
        %911 = vmatpush1.msra.mxu0 0.0
        %912 = vmatprep.subr.mxu0 0.0
        %913 = vmatpush1.msra.mxu0 0.0
        %914 = vmatprep.subr.mxu0 0.0
        %915 = vmatpush1.msra.mxu0 0.0
        %916 = vmatprep.subr.mxu0 0.0
        %917 = vmatpush1.msra.mxu0 0.0
        %918 = vmatprep.subr.mxu0 0.0
        %919 = vmatpush1.msra.mxu0 0.0
        %920 = vmatprep.subr.mxu0 0.0
        %921 = vmatpush1.msra.mxu0 0.0
        %922 = vmatprep.subr.mxu0 0.0
        %923 = vmatpush1.msra.mxu0 0.0
        %924 = vmatprep.subr.mxu0 0.0
        %925 = vmatpush1.msra.mxu0 0.0
        %926 = vmatprep.subr.mxu0 0.0
        %927 = vmatpush1.msra.mxu0 0.0
        %928 = vmatprep.subr.mxu0 0.0
        %929 = vmatpush1.msra.mxu0 0.0
        %930 = vmatprep.subr.mxu0 0.0
        %931 = vmatpush1.msra.mxu0 0.0
        %932 = vmatprep.subr.mxu0 0.0
        %933 = vmatpush1.msra.mxu0 0.0
        %934 = vmatprep.subr.mxu0 0.0
        %935 = vmatpush1.msra.mxu0 0.0
        %936 = vmatprep.subr.mxu0 0.0
        %937 = vmatpush1.msra.mxu0 0.0
        %938 = vmatprep.subr.mxu0 0.0
        %v939 = vand.u32 %v828, 4294901760
        %v940 = vsub.f32 %v828, %v939
        %v941 = vand.u32 %v940, 4294901760
        %v942 = vsub.f32 %v940, %v941
        %v943 = vand.u32 %v942, 4294901760
        %944 = vmatpush1.msra.mxu0 %v943
        %945 = vmatprep.subr.mxu0 0.0
        %v946 = vand.u32 %v827, 4294901760
        %v947 = vsub.f32 %v827, %v946
        %v948 = vand.u32 %v947, 4294901760
        %v949 = vsub.f32 %v947, %v948
        %v950 = vand.u32 %v949, 4294901760
        %951 = vmatpush1.msra.mxu0 %v950
        %952 = vmatprep.subr.mxu0 0.0
        %953 = vmatpush2.msra.mxu0 0.0
        %954 = vmatprep.subr.mxu0 0.0
        %955 = vmatpush2.msra.mxu0 0.0
        %956 = vmatprep.subr.mxu0 0.0
        %957 = vmatpush2.msra.mxu0 0.0
        %958 = vmatprep.subr.mxu0 0.0
        %959 = vmatpush2.msra.mxu0 0.0
        %960 = vmatprep.subr.mxu0 0.0
        %961 = vmatpush2.msra.mxu0 0.0
        %962 = vmatprep.subr.mxu0 0.0
        %963 = vmatpush2.msra.mxu0 0.0
        %964 = vmatprep.subr.mxu0 0.0
        %965 = vmatpush2.msra.mxu0 0.0
        %966 = vmatprep.subr.mxu0 0.0
        %967 = vmatpush2.msra.mxu0 0.0
        %968 = vmatprep.subr.mxu0 0.0
        %969 = vmatpush2.msra.mxu0 0.0
        %970 = vmatprep.subr.mxu0 0.0
        %971 = vmatpush2.msra.mxu0 0.0
        %972 = vmatprep.subr.mxu0 0.0
        %973 = vmatpush2.msra.mxu0 0.0
        %974 = vmatprep.subr.mxu0 0.0
        %975 = vmatpush2.msra.mxu0 0.0
        %976 = vmatprep.subr.mxu0 0.0
        %977 = vmatpush2.msra.mxu0 0.0
        %978 = vmatprep.subr.mxu0 0.0
        %979 = vmatpush2.msra.mxu0 0.0
        %980 = vmatprep.subr.mxu0 0.0
        %981 = vmatpush2.msra.mxu0 0.0
        %982 = vmatprep.subr.mxu0 0.0
        %983 = vmatpush2.msra.mxu0 0.0
        %984 = vmatprep.mubr.f32.mxu0 0.0
        %v985 = vand.u32 %v831, 4294901760
        %986 = vmatmul.mubr.f32.gmra.mxu0 %v985
        %v987 = vpop.f32.mrf.mxu0
        %v988 = vadd.f32 %v907, %v987
        %v989 = vpop.f32.mrf.mxu0
        %990 = vdwg.mxu0
        %991 = vmatprep.subr.mxu0 0.0
        %992 = vmatpush1.msra.mxu0 0.0
        %993 = vmatprep.subr.mxu0 0.0
        %994 = vmatpush1.msra.mxu0 0.0
        %995 = vmatprep.subr.mxu0 0.0
        %996 = vmatpush1.msra.mxu0 0.0
        %997 = vmatprep.subr.mxu0 0.0
        %998 = vmatpush1.msra.mxu0 0.0
        %999 = vmatprep.subr.mxu0 0.0
        %1000 = vmatpush1.msra.mxu0 0.0
        %1001 = vmatprep.subr.mxu0 0.0
        %1002 = vmatpush1.msra.mxu0 0.0
        %1003 = vmatprep.subr.mxu0 0.0
        %1004 = vmatpush1.msra.mxu0 0.0
        %1005 = vmatprep.subr.mxu0 0.0
        %1006 = vmatpush1.msra.mxu0 0.0
        %1007 = vmatprep.subr.mxu0 0.0
        %1008 = vmatpush1.msra.mxu0 0.0
        %1009 = vmatprep.subr.mxu0 0.0
        %1010 = vmatpush1.msra.mxu0 0.0
        %1011 = vmatprep.subr.mxu0 0.0
        %1012 = vmatpush1.msra.mxu0 0.0
        %1013 = vmatprep.subr.mxu0 0.0
        %1014 = vmatpush1.msra.mxu0 0.0
        %1015 = vmatprep.subr.mxu0 0.0
        %1016 = vmatpush1.msra.mxu0 0.0
        %1017 = vmatprep.subr.mxu0 0.0
        %1018 = vmatpush1.msra.mxu0 0.0
        %1019 = vmatprep.subr.mxu0 0.0
        %v1020 = vand.u32 %v828, 4294901760
        %v1021 = vsub.f32 %v828, %v1020
        %1022 = vmatpush1.msra.mxu0 %v1021
        %1023 = vmatprep.subr.mxu0 0.0
        %v1024 = vand.u32 %v827, 4294901760
        %v1025 = vsub.f32 %v827, %v1024
        %1026 = vmatpush1.msra.mxu0 %v1025
        %1027 = vmatprep.subr.mxu0 0.0
        %1028 = vmatpush2.msra.mxu0 0.0
        %1029 = vmatprep.subr.mxu0 0.0
        %1030 = vmatpush2.msra.mxu0 0.0
        %1031 = vmatprep.subr.mxu0 0.0
        %1032 = vmatpush2.msra.mxu0 0.0
        %1033 = vmatprep.subr.mxu0 0.0
        %1034 = vmatpush2.msra.mxu0 0.0
        %1035 = vmatprep.subr.mxu0 0.0
        %1036 = vmatpush2.msra.mxu0 0.0
        %1037 = vmatprep.subr.mxu0 0.0
        %1038 = vmatpush2.msra.mxu0 0.0
        %1039 = vmatprep.subr.mxu0 0.0
        %1040 = vmatpush2.msra.mxu0 0.0
        %1041 = vmatprep.subr.mxu0 0.0
        %1042 = vmatpush2.msra.mxu0 0.0
        %1043 = vmatprep.subr.mxu0 0.0
        %1044 = vmatpush2.msra.mxu0 0.0
        %1045 = vmatprep.subr.mxu0 0.0
        %1046 = vmatpush2.msra.mxu0 0.0
        %1047 = vmatprep.subr.mxu0 0.0
        %1048 = vmatpush2.msra.mxu0 0.0
        %1049 = vmatprep.subr.mxu0 0.0
        %1050 = vmatpush2.msra.mxu0 0.0
        %1051 = vmatprep.subr.mxu0 0.0
        %1052 = vmatpush2.msra.mxu0 0.0
        %1053 = vmatprep.subr.mxu0 0.0
        %1054 = vmatpush2.msra.mxu0 0.0
        %1055 = vmatprep.subr.mxu0 0.0
        %1056 = vmatpush2.msra.mxu0 0.0
        %1057 = vmatprep.subr.mxu0 0.0
        %1058 = vmatpush2.msra.mxu0 0.0
        %1059 = vmatprep.mubr.f32.mxu0 0.0
        %v1060 = vand.u32 %v831, 4294901760
        %v1061 = vsub.f32 %v831, %v1060
        %1062 = vmatmul.mubr.f32.gmra.mxu0 %v1061
        %v1063 = vpop.f32.mrf.mxu0
        %v1064 = vadd.f32 %v988, %v1063
        %v1065 = vpop.f32.mrf.mxu0
        %1066 = vdwg.mxu0
        %1067 = vmatprep.subr.mxu0 0.0
        %1068 = vmatpush1.msra.mxu0 0.0
        %1069 = vmatprep.subr.mxu0 0.0
        %1070 = vmatpush1.msra.mxu0 0.0
        %1071 = vmatprep.subr.mxu0 0.0
        %1072 = vmatpush1.msra.mxu0 0.0
        %1073 = vmatprep.subr.mxu0 0.0
        %1074 = vmatpush1.msra.mxu0 0.0
        %1075 = vmatprep.subr.mxu0 0.0
        %1076 = vmatpush1.msra.mxu0 0.0
        %1077 = vmatprep.subr.mxu0 0.0
        %1078 = vmatpush1.msra.mxu0 0.0
        %1079 = vmatprep.subr.mxu0 0.0
        %1080 = vmatpush1.msra.mxu0 0.0
        %1081 = vmatprep.subr.mxu0 0.0
        %1082 = vmatpush1.msra.mxu0 0.0
        %1083 = vmatprep.subr.mxu0 0.0
        %1084 = vmatpush1.msra.mxu0 0.0
        %1085 = vmatprep.subr.mxu0 0.0
        %1086 = vmatpush1.msra.mxu0 0.0
        %1087 = vmatprep.subr.mxu0 0.0
        %1088 = vmatpush1.msra.mxu0 0.0
        %1089 = vmatprep.subr.mxu0 0.0
        %1090 = vmatpush1.msra.mxu0 0.0
        %1091 = vmatprep.subr.mxu0 0.0
        %1092 = vmatpush1.msra.mxu0 0.0
        %1093 = vmatprep.subr.mxu0 0.0
        %1094 = vmatpush1.msra.mxu0 0.0
        %1095 = vmatprep.subr.mxu0 0.0
        %v1096 = vand.u32 %v828, 4294901760
        %1097 = vmatpush1.msra.mxu0 %v1096
        %1098 = vmatprep.subr.mxu0 0.0
        %v1099 = vand.u32 %v827, 4294901760
        %1100 = vmatpush1.msra.mxu0 %v1099
        %1101 = vmatprep.subr.mxu0 0.0
        %1102 = vmatpush2.msra.mxu0 0.0
        %1103 = vmatprep.subr.mxu0 0.0
        %1104 = vmatpush2.msra.mxu0 0.0
        %1105 = vmatprep.subr.mxu0 0.0
        %1106 = vmatpush2.msra.mxu0 0.0
        %1107 = vmatprep.subr.mxu0 0.0
        %1108 = vmatpush2.msra.mxu0 0.0
        %1109 = vmatprep.subr.mxu0 0.0
        %1110 = vmatpush2.msra.mxu0 0.0
        %1111 = vmatprep.subr.mxu0 0.0
        %1112 = vmatpush2.msra.mxu0 0.0
        %1113 = vmatprep.subr.mxu0 0.0
        %1114 = vmatpush2.msra.mxu0 0.0
        %1115 = vmatprep.subr.mxu0 0.0
        %1116 = vmatpush2.msra.mxu0 0.0
        %1117 = vmatprep.subr.mxu0 0.0
        %1118 = vmatpush2.msra.mxu0 0.0
        %1119 = vmatprep.subr.mxu0 0.0
        %1120 = vmatpush2.msra.mxu0 0.0
        %1121 = vmatprep.subr.mxu0 0.0
        %1122 = vmatpush2.msra.mxu0 0.0
        %1123 = vmatprep.subr.mxu0 0.0
        %1124 = vmatpush2.msra.mxu0 0.0
        %1125 = vmatprep.subr.mxu0 0.0
        %1126 = vmatpush2.msra.mxu0 0.0
        %1127 = vmatprep.subr.mxu0 0.0
        %1128 = vmatpush2.msra.mxu0 0.0
        %1129 = vmatprep.subr.mxu0 0.0
        %1130 = vmatpush2.msra.mxu0 0.0
        %1131 = vmatprep.subr.mxu0 0.0
        %1132 = vmatpush2.msra.mxu0 0.0
        %1133 = vmatprep.mubr.f32.mxu0 0.0
        %v1134 = vand.u32 %v831, 4294901760
        %v1135 = vsub.f32 %v831, %v1134
        %v1136 = vand.u32 %v1135, 4294901760
        %1137 = vmatmul.mubr.f32.gmra.mxu0 %v1136
        %v1138 = vpop.f32.mrf.mxu0
        %v1139 = vadd.f32 %v1064, %v1138
        %v1140 = vpop.f32.mrf.mxu0
        %1141 = vdwg.mxu0
        %1142 = vmatprep.subr.mxu0 0.0
        %1143 = vmatpush1.msra.mxu0 0.0
        %1144 = vmatprep.subr.mxu0 0.0
        %1145 = vmatpush1.msra.mxu0 0.0
        %1146 = vmatprep.subr.mxu0 0.0
        %1147 = vmatpush1.msra.mxu0 0.0
        %1148 = vmatprep.subr.mxu0 0.0
        %1149 = vmatpush1.msra.mxu0 0.0
        %1150 = vmatprep.subr.mxu0 0.0
        %1151 = vmatpush1.msra.mxu0 0.0
        %1152 = vmatprep.subr.mxu0 0.0
        %1153 = vmatpush1.msra.mxu0 0.0
        %1154 = vmatprep.subr.mxu0 0.0
        %1155 = vmatpush1.msra.mxu0 0.0
        %1156 = vmatprep.subr.mxu0 0.0
        %1157 = vmatpush1.msra.mxu0 0.0
        %1158 = vmatprep.subr.mxu0 0.0
        %1159 = vmatpush1.msra.mxu0 0.0
        %1160 = vmatprep.subr.mxu0 0.0
        %1161 = vmatpush1.msra.mxu0 0.0
        %1162 = vmatprep.subr.mxu0 0.0
        %1163 = vmatpush1.msra.mxu0 0.0
        %1164 = vmatprep.subr.mxu0 0.0
        %1165 = vmatpush1.msra.mxu0 0.0
        %1166 = vmatprep.subr.mxu0 0.0
        %1167 = vmatpush1.msra.mxu0 0.0
        %1168 = vmatprep.subr.mxu0 0.0
        %1169 = vmatpush1.msra.mxu0 0.0
        %1170 = vmatprep.subr.mxu0 0.0
        %v1171 = vand.u32 %v828, 4294901760
        %v1172 = vsub.f32 %v828, %v1171
        %v1173 = vand.u32 %v1172, 4294901760
        %1174 = vmatpush1.msra.mxu0 %v1173
        %1175 = vmatprep.subr.mxu0 0.0
        %v1176 = vand.u32 %v827, 4294901760
        %v1177 = vsub.f32 %v827, %v1176
        %v1178 = vand.u32 %v1177, 4294901760
        %1179 = vmatpush1.msra.mxu0 %v1178
        %1180 = vmatprep.subr.mxu0 0.0
        %1181 = vmatpush2.msra.mxu0 0.0
        %1182 = vmatprep.subr.mxu0 0.0
        %1183 = vmatpush2.msra.mxu0 0.0
        %1184 = vmatprep.subr.mxu0 0.0
        %1185 = vmatpush2.msra.mxu0 0.0
        %1186 = vmatprep.subr.mxu0 0.0
        %1187 = vmatpush2.msra.mxu0 0.0
        %1188 = vmatprep.subr.mxu0 0.0
        %1189 = vmatpush2.msra.mxu0 0.0
        %1190 = vmatprep.subr.mxu0 0.0
        %1191 = vmatpush2.msra.mxu0 0.0
        %1192 = vmatprep.subr.mxu0 0.0
        %1193 = vmatpush2.msra.mxu0 0.0
        %1194 = vmatprep.subr.mxu0 0.0
        %1195 = vmatpush2.msra.mxu0 0.0
        %1196 = vmatprep.subr.mxu0 0.0
        %1197 = vmatpush2.msra.mxu0 0.0
        %1198 = vmatprep.subr.mxu0 0.0
        %1199 = vmatpush2.msra.mxu0 0.0
        %1200 = vmatprep.subr.mxu0 0.0
        %1201 = vmatpush2.msra.mxu0 0.0
        %1202 = vmatprep.subr.mxu0 0.0
        %1203 = vmatpush2.msra.mxu0 0.0
        %1204 = vmatprep.subr.mxu0 0.0
        %1205 = vmatpush2.msra.mxu0 0.0
        %1206 = vmatprep.subr.mxu0 0.0
        %1207 = vmatpush2.msra.mxu0 0.0
        %1208 = vmatprep.subr.mxu0 0.0
        %1209 = vmatpush2.msra.mxu0 0.0
        %1210 = vmatprep.subr.mxu0 0.0
        %1211 = vmatpush2.msra.mxu0 0.0
        %1212 = vmatprep.mubr.f32.mxu0 0.0
        %v1213 = vand.u32 %v831, 4294901760
        %1214 = vmatmul.mubr.f32.gmra.mxu0 %v1213
        %v1215 = vpop.f32.mrf.mxu0
        %v1216 = vadd.f32 %v1139, %v1215
        %v1217 = vpop.f32.mrf.mxu0
        %1218 = vdwg.mxu0
        %1219 = vmatprep.subr.mxu0 0.0
        %1220 = vmatpush1.msra.mxu0 0.0
        %1221 = vmatprep.subr.mxu0 0.0
        %1222 = vmatpush1.msra.mxu0 0.0
        %1223 = vmatprep.subr.mxu0 0.0
        %1224 = vmatpush1.msra.mxu0 0.0
        %1225 = vmatprep.subr.mxu0 0.0
        %1226 = vmatpush1.msra.mxu0 0.0
        %1227 = vmatprep.subr.mxu0 0.0
        %1228 = vmatpush1.msra.mxu0 0.0
        %1229 = vmatprep.subr.mxu0 0.0
        %1230 = vmatpush1.msra.mxu0 0.0
        %1231 = vmatprep.subr.mxu0 0.0
        %1232 = vmatpush1.msra.mxu0 0.0
        %1233 = vmatprep.subr.mxu0 0.0
        %1234 = vmatpush1.msra.mxu0 0.0
        %1235 = vmatprep.subr.mxu0 0.0
        %1236 = vmatpush1.msra.mxu0 0.0
        %1237 = vmatprep.subr.mxu0 0.0
        %1238 = vmatpush1.msra.mxu0 0.0
        %1239 = vmatprep.subr.mxu0 0.0
        %1240 = vmatpush1.msra.mxu0 0.0
        %1241 = vmatprep.subr.mxu0 0.0
        %1242 = vmatpush1.msra.mxu0 0.0
        %1243 = vmatprep.subr.mxu0 0.0
        %1244 = vmatpush1.msra.mxu0 0.0
        %1245 = vmatprep.subr.mxu0 0.0
        %1246 = vmatpush1.msra.mxu0 0.0
        %1247 = vmatprep.subr.mxu0 0.0
        %v1248 = vand.u32 %v828, 4294901760
        %1249 = vmatpush1.msra.mxu0 %v1248
        %1250 = vmatprep.subr.mxu0 0.0
        %v1251 = vand.u32 %v827, 4294901760
        %1252 = vmatpush1.msra.mxu0 %v1251
        %1253 = vmatprep.subr.mxu0 0.0
        %1254 = vmatpush2.msra.mxu0 0.0
        %1255 = vmatprep.subr.mxu0 0.0
        %1256 = vmatpush2.msra.mxu0 0.0
        %1257 = vmatprep.subr.mxu0 0.0
        %1258 = vmatpush2.msra.mxu0 0.0
        %1259 = vmatprep.subr.mxu0 0.0
        %1260 = vmatpush2.msra.mxu0 0.0
        %1261 = vmatprep.subr.mxu0 0.0
        %1262 = vmatpush2.msra.mxu0 0.0
        %1263 = vmatprep.subr.mxu0 0.0
        %1264 = vmatpush2.msra.mxu0 0.0
        %1265 = vmatprep.subr.mxu0 0.0
        %1266 = vmatpush2.msra.mxu0 0.0
        %1267 = vmatprep.subr.mxu0 0.0
        %1268 = vmatpush2.msra.mxu0 0.0
        %1269 = vmatprep.subr.mxu0 0.0
        %1270 = vmatpush2.msra.mxu0 0.0
        %1271 = vmatprep.subr.mxu0 0.0
        %1272 = vmatpush2.msra.mxu0 0.0
        %1273 = vmatprep.subr.mxu0 0.0
        %1274 = vmatpush2.msra.mxu0 0.0
        %1275 = vmatprep.subr.mxu0 0.0
        %1276 = vmatpush2.msra.mxu0 0.0
        %1277 = vmatprep.subr.mxu0 0.0
        %1278 = vmatpush2.msra.mxu0 0.0
        %1279 = vmatprep.subr.mxu0 0.0
        %1280 = vmatpush2.msra.mxu0 0.0
        %1281 = vmatprep.subr.mxu0 0.0
        %1282 = vmatpush2.msra.mxu0 0.0
        %1283 = vmatprep.subr.mxu0 0.0
        %1284 = vmatpush2.msra.mxu0 0.0
        %1285 = vmatprep.mubr.f32.mxu0 0.0
        %v1286 = vand.u32 %v831, 4294901760
        %1287 = vmatmul.mubr.f32.gmra.mxu0 %v1286
        %v1288 = vpop.f32.mrf.mxu0
        %v1289 = vadd.f32 %v1216, %v1288
        %v1290 = vpop.f32.mrf.mxu0
        %1291 = vdwg.mxu0
        %v1292 = vld [vmem:[#allocation4] sm:$0xf]
        %v1293 = vmul.f32 %v1289, %v1289
        %v1294 = vadd.f32 %v1292, %v1293
        %vm1295 = vcmask 60416
        %1296 = vst.msk [vmem:[#allocation4] sm:$0xf] %vm1295, %v1294
        %p1297 = scmp.eq.s32.totalorder %s31, 1
        %p1298 = pnand %p289, %p1297
        %p1299 = pneg %p1298
        // Predicated region
        $region53: #{tpu_custom_call.1} parent=35 // pred_check
          _
        $region54: #{tpu_custom_call.1} parent=35 // pred_check_branch
          %1301 = sbr.rel (%p1298) target = $region56
        $region55: #{tpu_custom_call.1} parent=35 // pred_region
          %v1302 = vld [vmem:[#allocation4] sm:$0xf]
          %v1303 = vsel %vm1295, %v1302, 0.0
          %1304 = vadd.xlane.f32.xlu0 %v1303
          %v1305 = vpop.xlane.xlu0 %1304
          %v1306 = vrot.slane %v1305, 4
          %v1307 = vadd.f32 %v1305, %v1306
          %v1308 = vrot.slane %v1307, 2
          %v1309 = vadd.f32 %v1307, %v1308
          %v1310 = vrot.slane %v1309, 1
          %v1311 = vadd.f32 %v1309, %v1310
          %s1312 = vtos %v1311
          %s1313 = smul.f32 %s1312, 2.170139e-06
          %v1314 = vstv %s1313
          %1315 = vst [vmem:[%s286] sm:$0xff] %v1314
        $region56: #{tpu_custom_call.1} parent=35 // pred_fallthru
          _
        %s1316 = sand.u32 %s153, 1
        %s1317 = scalar_lea.sflag [#allocation7], %s1316
        %s1318 = sand.u32 %s153, 1
        %s1319 = smul.addr %s1318, 8
        %s1320 = scalar_lea.vmem [#allocation10], %s1319
        // Predicated region
        $region57: #{tpu_custom_call.1} parent=35 // pred_check
          %p1321 = pneg %p163
        $region58: #{tpu_custom_call.1} parent=35 // pred_check_branch
          %1323 = sbr.rel (%p1321) target = $region60
        $region59: #{tpu_custom_call.1} parent=35 // pred_region
          %s1325 = ssub.s32 128, 128
          %1326 = vsyncadd %s1317, %s1325
          %s1327 = smul.addr %s29, 128
          %s1328 = scalar_lea.hbm %s4, %s1327
          %s1330 = sshll.u32 %s1320, 4
          %s1331 = int_to_ptr.vmem [resolvable:$true] %s1330
          %1333 = dma.vmem_to_hbm [thread:$0]  %s1331, 128, %s1328, %s1317
        $region60: #{tpu_custom_call.1} parent=35 // pred_fallthru
          _
      $region36: #{tpu_custom_call.1} parent=5 // pred_fallthru
        _
      %p1334 = scmp.le.s32.totalorder 2, %s19
      // Predicated region
      $region61: #{tpu_custom_call.1} parent=5 // pred_check
        %p1335 = pneg %p1334
      $region62: #{tpu_custom_call.1} parent=5 // pred_check_branch
        %1337 = sbr.rel (%p1335) target = $region64
      $region63: #{tpu_custom_call.1} parent=5 // pred_region
        %s1338 = ssub.s32 %s19, 2
        // Predicated region
        $region65: #{tpu_custom_call.1} parent=63 // pred_check
          %p1339 = pneg %p169
        $region66: #{tpu_custom_call.1} parent=63 // pred_check_branch
          %1341 = sbr.rel (%p1339) target = $region68
        $region67: #{tpu_custom_call.1} parent=63 // pred_region
          %s1342 = sand.u32 %s154, 1
          %s1343 = scalar_lea.sflag [#allocation7], %s1342
          %s1344 = sand.u32 %s154, 1
          %s1345 = smul.addr %s1344, 8
          %s1346 = scalar_lea.vmem [#allocation10], %s1345
          %1347 = dma.done %s1343, 128
        $region68: #{tpu_custom_call.1} parent=63 // pred_fallthru
          _
      $region64: #{tpu_custom_call.1} parent=5 // pred_fallthru
        _
    $region6: #{tpu_custom_call.1} parent=1 // loop_footer
      %s23 = sadd.s32 1, %s19
    $region7: #{tpu_custom_call.1} parent=1 // loop_footer_branch
      %18 = sbr.rel target = $region3
    $region8: #{tpu_custom_call.1} parent=1 // loop_exit
      _
    %1348 = vsyncpa [#allocation6], 1
    %s1349 = scalar_lea.sflag [#allocation6], 1
    %1350 = vsyncpa %s1349, 1
    %1351 = vsyncpa [#allocation9], 1
    %s1352 = scalar_lea.sflag [#allocation9], 1
    %1353 = vsyncpa %s1352, 1
    %1354 = vsyncpa [#allocation7], 1
    %s1355 = scalar_lea.sflag [#allocation7], 1
    %1356 = vsyncpa %s1355, 1

</llo_original>
